<compile_context>
chip_gen: v5e
topology: v5e:2x2
jax: 0.10.0
libtpu: 0.0.40
codegen_flags: <defaults>
</compile_context>

<pallas_src>
import numpy as np
import jax
import jax.numpy as jnp
from jax import lax
from jax.experimental import pallas as pl
from jax.experimental.pallas import tpu as pltpu


# ----------------------------------------------------------------------------
# Kernel: full residual block for Nb batch elements per grid step.
# ----------------------------------------------------------------------------
def residual_block_kernel(x_ref,
                          s1_ref, b1_ref, w1_ref, cb1_ref,
                          s2_ref, b2_ref, w2_ref, cb2_ref,
                          s3_ref, b3_ref, w3_ref, cb3_ref,
                          o_ref,
                          pad_ref):
    Nb, H, W, Cin = x_ref.shape
    Cmid = w1_ref.shape[1]
    Cfin = w3_ref.shape[1]
    M = Nb * H * W

    # ---- bn1 + relu (BN folded into scale/bias, f32 on VPU) ----------------
    xf = x_ref[...].astype(jnp.float32).reshape(M, Cin)
    t = jnp.maximum(xf * s1_ref[...] + b1_ref[...], 0.0)

    # ---- conv1: 1x1 conv == channel matmul (MXU, bf16 operands, f32 acc) ---
    u = jnp.dot(t.astype(jnp.bfloat16), w1_ref[...],
                preferred_element_type=jnp.float32) + cb1_ref[...]

    # ---- bn2 + relu ---------------------------------------------------------
    u = jnp.maximum(u * s2_ref[...] + b2_ref[...], 0.0)

    # ---- conv2: 3x3 conv, padding=1, stride=1 -------------------------------
    # Stage the activation (already in MXU dtype bf16) into a zero-haloed VMEM
    # scratch.  Only the 4 halo strips are zeroed; the interior is fully
    # overwritten every step so a full-tile zero would be wasted stores.  The
    # halo is never written by any other path.
    zrow = jnp.zeros((Nb, 1, W + 2, Cmid), pad_ref.dtype)
    zcol = jnp.zeros((Nb, H + 2, 1, Cmid), pad_ref.dtype)
    pad_ref[:, 0:1, :, :] = zrow
    pad_ref[:, H + 1:H + 2, :, :] = zrow
    pad_ref[:, :, 0:1, :] = zcol
    pad_ref[:, :, W + 1:W + 2, :] = zcol
    pad_ref[:, 1:H + 1, 1:W + 1, :] = u.astype(jnp.bfloat16).reshape(Nb, H, W, Cmid)

    if Cmid >= 128:
        # Wide channels: 9 accumulating tap matmuls.  With K = Cmid >= 128 the
        # MXU runs at full rate per tap, and we avoid materializing the
        # (M, 9*Cmid) im2col buffer and the lane-axis concat entirely.
        v = jnp.zeros((M, Cmid), jnp.float32)
        for ky in range(3):
            for kx in range(3):
                tap = pad_ref[:, ky:ky + H, kx:kx + W, :].reshape(M, Cmid)
                off = (ky * 3 + kx) * Cmid
                v = v + jnp.dot(tap, w2_ref[off:off + Cmid, :],
                                preferred_element_type=jnp.float32)
        v = v + cb2_ref[...]
    else:
        # Narrow channels: fuse the 9 tap-matmuls into ONE matmul with
        # K = 9*Cmid so the MXU sees a reasonable contraction depth.
        cols = [pad_ref[:, ky:ky + H, kx:kx + W, :].reshape(M, Cmid)
                for ky in range(3) for kx in range(3)]
        col = jnp.concatenate(cols, axis=-1)                 # (M, 9*Cmid) bf16
        v = jnp.dot(col, w2_ref[...],
                    preferred_element_type=jnp.float32) + cb2_ref[...]

    # dropout(p=0.2): identity in inference mode
    # TODO(synk): training-mode dropout (random mask + 1/(1-p) scaling) not implemented.

    # ---- bn3 + relu ---------------------------------------------------------
    v = jnp.maximum(v * s3_ref[...] + b3_ref[...], 0.0)

    # ---- conv3: 1x1 conv + residual add -------------------------------------
    # Residual is re-read from VMEM (not kept live across the kernel); the
    # skip-connection add stays in f32.
    out = jnp.dot(v.astype(jnp.bfloat16), w3_ref[...],
                  preferred_element_type=jnp.float32) + cb3_ref[...]
    out = out + x_ref[...].astype(jnp.float32).reshape(M, Cfin)

    # TODO(synk): for Cfin < 128 a lane-dense (W*Cfin on lanes) output slab
    # would avoid masked partial stores; kept the proven (Nb,H,W,Cfin) store.
    o_ref[...] = out.reshape(Nb, H, W, Cfin).astype(o_ref.dtype)


# ----------------------------------------------------------------------------
# Generation-aware sizing helpers
# ----------------------------------------------------------------------------
def _device_kind():
    try:
        return jax.devices()[0].device_kind.lower()
    except Exception:
        return ""


def _tpu_vmem_capacity_bytes():
    try:
        return int(pltpu.get_tpu_info().vmem_capacity_bytes)
    except Exception:
        pass
    kind = _device_kind()
    if "v7" in kind or "tpu7" in kind or "7x" in kind:
        return 64 * 1024 * 1024           # v7x: 64 MiB per TensorCore
    return 128 * 1024 * 1024              # v5e / v6e: 128 MiB


def _tpu_num_tensorcores():
    kind = _device_kind()
    if "v7" in kind or "tpu7" in kind or "7x" in kind:
        return 2
    return 1


def _pick_batch_block(N, H, W, Cin, Cmid, Cfin, budget_bytes, num_cores):
    """Images per grid step, chosen against an explicit per-step VMEM budget.

    Single-core chips (v5e/v6e): largest divisor of N that fits the budget
    (bigger tile == better pipelining; no forced multi-step rule).
    Multi-core chips (v7x): additionally prefer >= 2 grid steps per core so
    DMA overlaps compute on every core, but never shrink M below ~512 rows.
    """
    HW = H * W

    def per_step_bytes(nb):
        m = nb * HW
        inp = 2 * nb * H * W * Cin * 4               # double-buffered input block (f32)
        out = 2 * nb * H * W * Cfin * 4              # double-buffered output block (f32)
        pad = nb * (H + 2) * (W + 2) * Cmid * 2      # bf16 pad scratch
        col = m * 9 * Cmid * 2 if Cmid < 128 else 0  # materialized im2col (bf16)
        live = m * (Cin + 3 * Cmid + Cfin) * 4       # rough f32 live intermediates
        return inp + out + pad + col + live

    divisors = [d for d in range(1, N + 1) if N % d == 0]
    fitting = [d for d in divisors if per_step_bytes(d) <= budget_bytes] or [1]
    nb = max(fitting)

    if num_cores >= 2:
        for want_steps in (2 * num_cores, num_cores):
            cands = [d for d in fitting if N // d >= want_steps and d * HW >= 512]
            if cands:
                nb = max(cands)
                break
    return nb


def _param_spec(arr, single_buffer):
    ndim = arr.ndim
    if single_buffer:
        # Constant-index operands: a second pipeline buffer only burns VMEM.
        return pl.BlockSpec(arr.shape, lambda n, _nd=ndim: (0,) * _nd,
                            pipeline_mode=pl.Buffered(1))
    return pl.BlockSpec(arr.shape, lambda n, _nd=ndim: (0,) * _nd)


# ----------------------------------------------------------------------------
# Forward (NHWC-native core + PyTorch-parity NCHW wrapper)
# ----------------------------------------------------------------------------
def _forward_nhwc(x, params):
    x = x.astype(jnp.float32)
    N, H, W, Cin = x.shape
    Cmid = params["w1"].shape[1]
    Cfin = params["w3"].shape[1]
    assert Cin == Cfin, "residual add (no downsample) requires Cin == out*k*4"

    # MXU operands pre-cast to bf16 once; BN scale/bias & conv bias stay f32.
    plist = [
        params["s1"], params["b1"],
        params["w1"].astype(jnp.bfloat16), params["cb1"],
        params["s2"], params["b2"],
        params["w2"].reshape(9 * Cmid, Cmid).astype(jnp.bfloat16), params["cb2"],
        params["s3"], params["b3"],
        params["w3"].astype(jnp.bfloat16), params["cb3"],
    ]

    param_bytes = sum(int(np.prod(p.shape)) * jnp.dtype(p.dtype).itemsize
                      for p in plist)
    # Only deviate from the default (double-buffered) param specs when the
    # duplicate weight buffer is big enough to matter for VMEM headroom.
    use_single_buffer = param_bytes > (512 * 1024)

    vmem_cap = _tpu_vmem_capacity_bytes()
    num_cores = _tpu_num_tensorcores()
    # ~48 MiB on v7x (64 MiB physical), ~96-100 MiB on v5e/v6e (128 MiB).
    vmem_limit = min(int(0.75 * vmem_cap), 100 * 1024 * 1024)

    resident_params = param_bytes * (1 if use_single_buffer else 2)
    budget = max(vmem_limit - resident_params - 2 * 1024 * 1024, 1 * 1024 * 1024)
    Nb = _pick_batch_block(N, H, W, Cin, Cmid, Cfin, budget, num_cores)
    grid = (N // Nb,)

    out = pl.pallas_call(
        residual_block_kernel,
        out_shape=jax.ShapeDtypeStruct((N, H, W, Cfin), jnp.float32),
        grid=grid,
        in_specs=[pl.BlockSpec((Nb, H, W, Cin), lambda n: (n, 0, 0, 0))]
                 + [_param_spec(p, use_single_buffer) for p in plist],
        out_specs=pl.BlockSpec((Nb, H, W, Cfin), lambda n: (n, 0, 0, 0)),
        scratch_shapes=[pltpu.VMEM((Nb, H + 2, W + 2, Cmid), jnp.bfloat16)],
        compiler_params=pltpu.CompilerParams(
            dimension_semantics=("parallel",),
            vmem_limit_bytes=vmem_limit),
    )(x, *plist)
    return out


# NHWC-native entry point: no layout transposes (preferred when the
# surrounding JAX model keeps activations NHWC end-to-end).
residual_block_forward_nhwc = jax.jit(_forward_nhwc)


@jax.jit
def residual_block_forward(x_nchw, params):
    # PyTorch-parity wrapper (NCHW in/out).  The two transposes are full HBM
    # round-trips of the activation; use the NHWC entry point to avoid them.
    x = jnp.transpose(x_nchw, (0, 2, 3, 1))
    out = _forward_nhwc(x, params)
    return jnp.transpose(out, (0, 3, 1, 2))


# ----------------------------------------------------------------------------
# Pure-JAX reference (inference-mode forward) for verification
# ----------------------------------------------------------------------------
def reference_forward(x_nchw, params):
    hi = lax.Precision.HIGHEST
    x = jnp.transpose(x_nchw, (0, 2, 3, 1)).astype(jnp.float32)
    Cmid = params["w1"].shape[1]

    t = jax.nn.relu(x * params["s1"] + params["b1"])
    u = jnp.einsum("nhwc,cd->nhwd", t, params["w1"], precision=hi) + params["cb1"]
    u = jax.nn.relu(u * params["s2"] + params["b2"])

    w2 = params["w2"].reshape(3, 3, Cmid, Cmid)  # HWIO
    v = lax.conv_general_dilated(
        u, w2, window_strides=(1, 1), padding=((1, 1), (1, 1)),
        dimension_numbers=("NHWC", "HWIO", "NHWC"), precision=hi) + params["cb2"]

    v = jax.nn.relu(v * params["s3"] + params["b3"])
    o = jnp.einsum("nhwc,cd->nhwd", v, params["w3"], precision=hi) + params["cb3"]
    o = o + x
    return jnp.transpose(o, (0, 3, 1, 2))


# ----------------------------------------------------------------------------
# Deterministic parameter construction
# ----------------------------------------------------------------------------
def folded_bn(key, C, eps=1e-5):
    k1, k2, k3, k4 = jax.random.split(key, 4)
    gamma = jax.random.uniform(k1, (C,), minval=0.5, maxval=1.5)
    beta = jax.random.normal(k2, (C,)) * 0.1
    mean = jax.random.normal(k3, (C,)) * 0.1
    var = jax.random.uniform(k4, (C,), minval=0.5, maxval=1.5)
    scale = gamma / jnp.sqrt(var + eps)
    bias = beta - mean * scale
    return (scale.reshape(1, C).astype(jnp.float32),
            bias.reshape(1, C).astype(jnp.float32))


def build_params(key, in_channels, out_channels, k_width):
    Cin = in_channels
    Cmid = out_channels * k_width          # conv1/conv2 output channels
    Cfin = Cmid * 4                        # conv3 output channels
    assert Cfin == Cin, "residual add (no downsample) requires Cin == out*k*4"

    keys = jax.random.split(key, 8)
    s1, b1 = folded_bn(keys[0], Cin)
    s2, b2 = folded_bn(keys[1], Cmid)
    s3, b3 = folded_bn(keys[2], Cmid)

    w1 = (jax.random.normal(keys[3], (Cin, Cmid)) / np.sqrt(Cin)).astype(jnp.float32)
    cb1 = (jax.random.normal(keys[4], (1, Cmid)) * 0.05).astype(jnp.float32)
    w2 = (jax.random.normal(keys[5], (9, Cmid, Cmid)) / np.sqrt(9 * Cmid)).astype(jnp.float32)
    cb2 = (jax.random.normal(keys[6], (1, Cmid)) * 0.05).astype(jnp.float32)
    w3 = (jax.random.normal(keys[7], (Cmid, Cfin)) / np.sqrt(Cmid)).astype(jnp.float32)
    cb3 = jnp.zeros((1, Cfin), jnp.float32)

    return {
        "s1": s1, "b1": b1, "w1": w1, "cb1": cb1,
        "s2": s2, "b2": b2, "w2": w2, "cb2": cb2,
        "s3": s3, "b3": b3, "w3": w3, "cb3": cb3,
    }


if __name__ == "__main__":
    # Small shapes consistent with the module: ResidualBlock(16, 2, k=2)
    # => conv1/conv2 channels = 4, conv3 channels = 16 == in_channels.
    N, Cin, H, W = 2, 16, 8, 8
    out_channels, k_width = 2, 2

    key = jax.random.PRNGKey(0)
    kx, kp = jax.random.split(key)
    x = jax.random.normal(kx, (N, Cin, H, W), dtype=jnp.float32)  # NCHW like PyTorch

    params = build_params(kp, Cin, out_channels, k_width)

    out = residual_block_forward(x, params)
    out = jax.block_until_ready(out)

    ref = jax.block_until_ready(reference_forward(x, params))
    # bf16 MXU operands (f32 accumulation) vs f32 HIGHEST-precision reference.
    np.testing.assert_allclose(np.asarray(out), np.asarray(ref), rtol=5e-2, atol=5e-2)

    print("KERNEL_OK")
</pallas_src>

<mosaic_0001>
module attributes {stable_mosaic.version = 11 : i64} {
  func.func @residual_block_kernel(%arg0: i32, %arg1: memref<2x8x8x16xf32, #tpu.memory_space<vmem>>, %arg2: memref<1x16xf32, #tpu.memory_space<vmem>>, %arg3: memref<1x16xf32, #tpu.memory_space<vmem>>, %arg4: memref<16x4xbf16, #tpu.memory_space<vmem>>, %arg5: memref<1x4xf32, #tpu.memory_space<vmem>>, %arg6: memref<1x4xf32, #tpu.memory_space<vmem>>, %arg7: memref<1x4xf32, #tpu.memory_space<vmem>>, %arg8: memref<36x4xbf16, #tpu.memory_space<vmem>>, %arg9: memref<1x4xf32, #tpu.memory_space<vmem>>, %arg10: memref<1x4xf32, #tpu.memory_space<vmem>>, %arg11: memref<1x4xf32, #tpu.memory_space<vmem>>, %arg12: memref<4x16xbf16, #tpu.memory_space<vmem>>, %arg13: memref<1x16xf32, #tpu.memory_space<vmem>>, %arg14: memref<2x8x8x16xf32, #tpu.memory_space<vmem>>, %arg15: memref<2x10x10x4xbf16, #tpu.memory_space<vmem>>) attributes {dimension_semantics = [#tpu.dimension_semantics<parallel>], iteration_bounds = array<i64: 1>, scalar_prefetch = 0 : i64, scratch_operands = 1 : i64, tpu.core_type = #tpu.core_type<tc>, window_params = [{transform_indices = @transform_0, window_bounds = array<i64: 2, 8, 8, 16>}, {pipeline_mode = #tpu.pipeline_mode<synchronous>, transform_indices = @transform_1, window_bounds = array<i64: 1, 16>}, {pipeline_mode = #tpu.pipeline_mode<synchronous>, transform_indices = @transform_2, window_bounds = array<i64: 1, 16>}, {pipeline_mode = #tpu.pipeline_mode<synchronous>, transform_indices = @transform_3, window_bounds = array<i64: 16, 4>}, {pipeline_mode = #tpu.pipeline_mode<synchronous>, transform_indices = @transform_4, window_bounds = array<i64: 1, 4>}, {pipeline_mode = #tpu.pipeline_mode<synchronous>, transform_indices = @transform_5, window_bounds = array<i64: 1, 4>}, {pipeline_mode = #tpu.pipeline_mode<synchronous>, transform_indices = @transform_6, window_bounds = array<i64: 1, 4>}, {pipeline_mode = #tpu.pipeline_mode<synchronous>, transform_indices = @transform_7, window_bounds = array<i64: 36, 4>}, {pipeline_mode = #tpu.pipeline_mode<synchronous>, transform_indices = @transform_8, window_bounds = array<i64: 1, 4>}, {pipeline_mode = #tpu.pipeline_mode<synchronous>, transform_indices = @transform_9, window_bounds = array<i64: 1, 4>}, {pipeline_mode = #tpu.pipeline_mode<synchronous>, transform_indices = @transform_10, window_bounds = array<i64: 1, 4>}, {pipeline_mode = #tpu.pipeline_mode<synchronous>, transform_indices = @transform_11, window_bounds = array<i64: 4, 16>}, {pipeline_mode = #tpu.pipeline_mode<synchronous>, transform_indices = @transform_12, window_bounds = array<i64: 1, 16>}, {transform_indices = @transform_13, window_bounds = array<i64: 2, 8, 8, 16>}]} {
    %c0 = arith.constant 0 : index
    %c0_0 = arith.constant 0 : index
    %c0_1 = arith.constant 0 : index
    %c0_2 = arith.constant 0 : index
    %0 = vector.load %arg1[%c0, %c0_0, %c0_1, %c0_2] : memref<2x8x8x16xf32, #tpu.memory_space<vmem>>, vector<2x8x8x16xf32>
    %1 = vector.shape_cast %0 : vector<2x8x8x16xf32> to vector<128x16xf32>
    %c0_3 = arith.constant 0 : index
    %c0_4 = arith.constant 0 : index
    %2 = vector.load %arg2[%c0_3, %c0_4] : memref<1x16xf32, #tpu.memory_space<vmem>>, vector<1x16xf32>
    %3 = vector.broadcast %2 : vector<1x16xf32> to vector<128x16xf32>
    %4 = arith.mulf %1, %3 : vector<128x16xf32>
    %c0_5 = arith.constant 0 : index
    %c0_6 = arith.constant 0 : index
    %5 = vector.load %arg3[%c0_5, %c0_6] : memref<1x16xf32, #tpu.memory_space<vmem>>, vector<1x16xf32>
    %6 = vector.broadcast %5 : vector<1x16xf32> to vector<128x16xf32>
    %7 = arith.addf %4, %6 : vector<128x16xf32>
    %cst = arith.constant 0.000000e+00 : f32
    %8 = vector.broadcast %cst : f32 to vector<128x16xf32>
    %9 = arith.maximumf %7, %8 : vector<128x16xf32>
    %10 = arith.truncf %9 : vector<128x16xf32> to vector<128x16xbf16>
    %c0_7 = arith.constant 0 : index
    %c0_8 = arith.constant 0 : index
    %11 = vector.load %arg4[%c0_7, %c0_8] : memref<16x4xbf16, #tpu.memory_space<vmem>>, vector<16x4xbf16>
    %cst_9 = arith.constant dense<0.000000e+00> : vector<128x4xf32>
    %12 = tpu.matmul %10, %11, %cst_9 {dimension_numbers = #tpu.dot_dimension_numbers<[1], [0], [0], [1], [0, 0, 1, 1], [], []>} : vector<128x16xbf16>, vector<16x4xbf16>, vector<128x4xf32> -> vector<128x4xf32>
    %c0_10 = arith.constant 0 : index
    %c0_11 = arith.constant 0 : index
    %13 = vector.load %arg5[%c0_10, %c0_11] : memref<1x4xf32, #tpu.memory_space<vmem>>, vector<1x4xf32>
    %14 = vector.broadcast %13 : vector<1x4xf32> to vector<128x4xf32>
    %15 = arith.addf %12, %14 : vector<128x4xf32>
    %c0_12 = arith.constant 0 : index
    %c0_13 = arith.constant 0 : index
    %16 = vector.load %arg6[%c0_12, %c0_13] : memref<1x4xf32, #tpu.memory_space<vmem>>, vector<1x4xf32>
    %17 = vector.broadcast %16 : vector<1x4xf32> to vector<128x4xf32>
    %18 = arith.mulf %15, %17 : vector<128x4xf32>
    %c0_14 = arith.constant 0 : index
    %c0_15 = arith.constant 0 : index
    %19 = vector.load %arg7[%c0_14, %c0_15] : memref<1x4xf32, #tpu.memory_space<vmem>>, vector<1x4xf32>
    %20 = vector.broadcast %19 : vector<1x4xf32> to vector<128x4xf32>
    %21 = arith.addf %18, %20 : vector<128x4xf32>
    %cst_16 = arith.constant 0.000000e+00 : f32
    %22 = vector.broadcast %cst_16 : f32 to vector<128x4xf32>
    %23 = arith.maximumf %21, %22 : vector<128x4xf32>
    %cst_17 = arith.constant 0.000000e+00 : bf16
    %24 = vector.broadcast %cst_17 : bf16 to vector<2x1x10x4xbf16>
    %cst_18 = arith.constant 0.000000e+00 : bf16
    %25 = vector.broadcast %cst_18 : bf16 to vector<2x10x1x4xbf16>
    %c0_19 = arith.constant 0 : index
    %c0_20 = arith.constant 0 : index
    %c0_21 = arith.constant 0 : index
    %c0_22 = arith.constant 0 : index
    %26 = vector.load %arg15[%c0_19, %c0_20, %c0_21, %c0_22] : memref<2x10x10x4xbf16, #tpu.memory_space<vmem>>, vector<2x1x10x4xbf16>
    tpu.vector_store %arg15[%c0_19, %c0_20, %c0_21, %c0_22], %24 {strides = array<i32>} : memref<2x10x10x4xbf16, #tpu.memory_space<vmem>>, vector<2x1x10x4xbf16>,
    %c0_23 = arith.constant 0 : index
    %c9 = arith.constant 9 : index
    %c0_24 = arith.constant 0 : index
    %c0_25 = arith.constant 0 : index
    %27 = vector.load %arg15[%c0_23, %c9, %c0_24, %c0_25] : memref<2x10x10x4xbf16, #tpu.memory_space<vmem>>, vector<2x1x10x4xbf16>
    tpu.vector_store %arg15[%c0_23, %c9, %c0_24, %c0_25], %24 {strides = array<i32>} : memref<2x10x10x4xbf16, #tpu.memory_space<vmem>>, vector<2x1x10x4xbf16>,
    %c0_26 = arith.constant 0 : index
    %c0_27 = arith.constant 0 : index
    %c0_28 = arith.constant 0 : index
    %c0_29 = arith.constant 0 : index
    %28 = vector.load %arg15[%c0_26, %c0_27, %c0_28, %c0_29] : memref<2x10x10x4xbf16, #tpu.memory_space<vmem>>, vector<2x10x1x4xbf16>
    tpu.vector_store %arg15[%c0_26, %c0_27, %c0_28, %c0_29], %25 {strides = array<i32>} : memref<2x10x10x4xbf16, #tpu.memory_space<vmem>>, vector<2x10x1x4xbf16>,
    %c0_30 = arith.constant 0 : index
    %c0_31 = arith.constant 0 : index
    %c9_32 = arith.constant 9 : index
    %c0_33 = arith.constant 0 : index
    %29 = vector.load %arg15[%c0_30, %c0_31, %c9_32, %c0_33] : memref<2x10x10x4xbf16, #tpu.memory_space<vmem>>, vector<2x10x1x4xbf16>
    tpu.vector_store %arg15[%c0_30, %c0_31, %c9_32, %c0_33], %25 {strides = array<i32>} : memref<2x10x10x4xbf16, #tpu.memory_space<vmem>>, vector<2x10x1x4xbf16>,
    %30 = arith.truncf %23 : vector<128x4xf32> to vector<128x4xbf16>
    %31 = vector.shape_cast %30 : vector<128x4xbf16> to vector<2x8x8x4xbf16>
    %c0_34 = arith.constant 0 : index
    %c1 = arith.constant 1 : index
    %c1_35 = arith.constant 1 : index
    %c0_36 = arith.constant 0 : index
    %32 = vector.load %arg15[%c0_34, %c1, %c1_35, %c0_36] : memref<2x10x10x4xbf16, #tpu.memory_space<vmem>>, vector<2x8x8x4xbf16>
    tpu.vector_store %arg15[%c0_34, %c1, %c1_35, %c0_36], %31 {strides = array<i32>} : memref<2x10x10x4xbf16, #tpu.memory_space<vmem>>, vector<2x8x8x4xbf16>,
    %c0_37 = arith.constant 0 : index
    %c0_38 = arith.constant 0 : index
    %c0_39 = arith.constant 0 : index
    %c0_40 = arith.constant 0 : index
    %33 = vector.load %arg15[%c0_37, %c0_38, %c0_39, %c0_40] : memref<2x10x10x4xbf16, #tpu.memory_space<vmem>>, vector<2x8x8x4xbf16>
    %34 = vector.shape_cast %33 : vector<2x8x8x4xbf16> to vector<128x4xbf16>
    %c0_41 = arith.constant 0 : index
    %c0_42 = arith.constant 0 : index
    %c1_43 = arith.constant 1 : index
    %c0_44 = arith.constant 0 : index
    %35 = vector.load %arg15[%c0_41, %c0_42, %c1_43, %c0_44] : memref<2x10x10x4xbf16, #tpu.memory_space<vmem>>, vector<2x8x8x4xbf16>
    %36 = vector.shape_cast %35 : vector<2x8x8x4xbf16> to vector<128x4xbf16>
    %c0_45 = arith.constant 0 : index
    %c0_46 = arith.constant 0 : index
    %c2 = arith.constant 2 : index
    %c0_47 = arith.constant 0 : index
    %37 = vector.load %arg15[%c0_45, %c0_46, %c2, %c0_47] : memref<2x10x10x4xbf16, #tpu.memory_space<vmem>>, vector<2x8x8x4xbf16>
    %38 = vector.shape_cast %37 : vector<2x8x8x4xbf16> to vector<128x4xbf16>
    %c0_48 = arith.constant 0 : index
    %c1_49 = arith.constant 1 : index
    %c0_50 = arith.constant 0 : index
    %c0_51 = arith.constant 0 : index
    %39 = vector.load %arg15[%c0_48, %c1_49, %c0_50, %c0_51] : memref<2x10x10x4xbf16, #tpu.memory_space<vmem>>, vector<2x8x8x4xbf16>
    %40 = vector.shape_cast %39 : vector<2x8x8x4xbf16> to vector<128x4xbf16>
    %c0_52 = arith.constant 0 : index
    %c1_53 = arith.constant 1 : index
    %c1_54 = arith.constant 1 : index
    %c0_55 = arith.constant 0 : index
    %41 = vector.load %arg15[%c0_52, %c1_53, %c1_54, %c0_55] : memref<2x10x10x4xbf16, #tpu.memory_space<vmem>>, vector<2x8x8x4xbf16>
    %42 = vector.shape_cast %41 : vector<2x8x8x4xbf16> to vector<128x4xbf16>
    %c0_56 = arith.constant 0 : index
    %c1_57 = arith.constant 1 : index
    %c2_58 = arith.constant 2 : index
    %c0_59 = arith.constant 0 : index
    %43 = vector.load %arg15[%c0_56, %c1_57, %c2_58, %c0_59] : memref<2x10x10x4xbf16, #tpu.memory_space<vmem>>, vector<2x8x8x4xbf16>
    %44 = vector.shape_cast %43 : vector<2x8x8x4xbf16> to vector<128x4xbf16>
    %c0_60 = arith.constant 0 : index
    %c2_61 = arith.constant 2 : index
    %c0_62 = arith.constant 0 : index
    %c0_63 = arith.constant 0 : index
    %45 = vector.load %arg15[%c0_60, %c2_61, %c0_62, %c0_63] : memref<2x10x10x4xbf16, #tpu.memory_space<vmem>>, vector<2x8x8x4xbf16>
    %46 = vector.shape_cast %45 : vector<2x8x8x4xbf16> to vector<128x4xbf16>
    %c0_64 = arith.constant 0 : index
    %c2_65 = arith.constant 2 : index
    %c1_66 = arith.constant 1 : index
    %c0_67 = arith.constant 0 : index
    %47 = vector.load %arg15[%c0_64, %c2_65, %c1_66, %c0_67] : memref<2x10x10x4xbf16, #tpu.memory_space<vmem>>, vector<2x8x8x4xbf16>
    %48 = vector.shape_cast %47 : vector<2x8x8x4xbf16> to vector<128x4xbf16>
    %c0_68 = arith.constant 0 : index
    %c2_69 = arith.constant 2 : index
    %c2_70 = arith.constant 2 : index
    %c0_71 = arith.constant 0 : index
    %49 = vector.load %arg15[%c0_68, %c2_69, %c2_70, %c0_71] : memref<2x10x10x4xbf16, #tpu.memory_space<vmem>>, vector<2x8x8x4xbf16>
    %50 = vector.shape_cast %49 : vector<2x8x8x4xbf16> to vector<128x4xbf16>
    %51 = tpu.concatenate %34, %36, %38, %40, %42, %44, %46, %48, %50 in 1 : vector<128x4xbf16>, vector<128x4xbf16>, vector<128x4xbf16>, vector<128x4xbf16>, vector<128x4xbf16>, vector<128x4xbf16>, vector<128x4xbf16>, vector<128x4xbf16>, vector<128x4xbf16> -> vector<128x36xbf16>
    %c0_72 = arith.constant 0 : index
    %c0_73 = arith.constant 0 : index
    %52 = vector.load %arg8[%c0_72, %c0_73] : memref<36x4xbf16, #tpu.memory_space<vmem>>, vector<36x4xbf16>
    %cst_74 = arith.constant dense<0.000000e+00> : vector<128x4xf32>
    %53 = tpu.matmul %51, %52, %cst_74 {dimension_numbers = #tpu.dot_dimension_numbers<[1], [0], [0], [1], [0, 0, 1, 1], [], []>} : vector<128x36xbf16>, vector<36x4xbf16>, vector<128x4xf32> -> vector<128x4xf32>
    %c0_75 = arith.constant 0 : index
    %c0_76 = arith.constant 0 : index
    %54 = vector.load %arg9[%c0_75, %c0_76] : memref<1x4xf32, #tpu.memory_space<vmem>>, vector<1x4xf32>
    %55 = vector.broadcast %54 : vector<1x4xf32> to vector<128x4xf32>
    %56 = arith.addf %53, %55 : vector<128x4xf32>
    %c0_77 = arith.constant 0 : index
    %c0_78 = arith.constant 0 : index
    %57 = vector.load %arg10[%c0_77, %c0_78] : memref<1x4xf32, #tpu.memory_space<vmem>>, vector<1x4xf32>
    %58 = vector.broadcast %57 : vector<1x4xf32> to vector<128x4xf32>
    %59 = arith.mulf %56, %58 : vector<128x4xf32>
    %c0_79 = arith.constant 0 : index
    %c0_80 = arith.constant 0 : index
    %60 = vector.load %arg11[%c0_79, %c0_80] : memref<1x4xf32, #tpu.memory_space<vmem>>, vector<1x4xf32>
    %61 = vector.broadcast %60 : vector<1x4xf32> to vector<128x4xf32>
    %62 = arith.addf %59, %61 : vector<128x4xf32>
    %cst_81 = arith.constant 0.000000e+00 : f32
    %63 = vector.broadcast %cst_81 : f32 to vector<128x4xf32>
    %64 = arith.maximumf %62, %63 : vector<128x4xf32>
    %65 = arith.truncf %64 : vector<128x4xf32> to vector<128x4xbf16>
    %c0_82 = arith.constant 0 : index
    %c0_83 = arith.constant 0 : index
    %66 = vector.load %arg12[%c0_82, %c0_83] : memref<4x16xbf16, #tpu.memory_space<vmem>>, vector<4x16xbf16>
    %cst_84 = arith.constant dense<0.000000e+00> : vector<128x16xf32>
    %67 = tpu.matmul %65, %66, %cst_84 {dimension_numbers = #tpu.dot_dimension_numbers<[1], [0], [0], [1], [0, 0, 1, 1], [], []>} : vector<128x4xbf16>, vector<4x16xbf16>, vector<128x16xf32> -> vector<128x16xf32>
    %c0_85 = arith.constant 0 : index
    %c0_86 = arith.constant 0 : index
    %68 = vector.load %arg13[%c0_85, %c0_86] : memref<1x16xf32, #tpu.memory_space<vmem>>, vector<1x16xf32>
    %69 = vector.broadcast %68 : vector<1x16xf32> to vector<128x16xf32>
    %70 = arith.addf %67, %69 : vector<128x16xf32>
    %c0_87 = arith.constant 0 : index
    %c0_88 = arith.constant 0 : index
    %c0_89 = arith.constant 0 : index
    %c0_90 = arith.constant 0 : index
    %71 = vector.load %arg1[%c0_87, %c0_88, %c0_89, %c0_90] : memref<2x8x8x16xf32, #tpu.memory_space<vmem>>, vector<2x8x8x16xf32>
    %72 = vector.shape_cast %71 : vector<2x8x8x16xf32> to vector<128x16xf32>
    %73 = arith.addf %70, %72 : vector<128x16xf32>
    %74 = vector.shape_cast %73 : vector<128x16xf32> to vector<2x8x8x16xf32>
    %c0_91 = arith.constant 0 : index
    %c0_92 = arith.constant 0 : index
    %c0_93 = arith.constant 0 : index
    %c0_94 = arith.constant 0 : index
    %75 = vector.load %arg14[%c0_91, %c0_92, %c0_93, %c0_94] : memref<2x8x8x16xf32, #tpu.memory_space<vmem>>, vector<2x8x8x16xf32>
    tpu.vector_store %arg14[%c0_91, %c0_92, %c0_93, %c0_94], %74 {strides = array<i32>} : memref<2x8x8x16xf32, #tpu.memory_space<vmem>>, vector<2x8x8x16xf32>,
    return
  }
  func.func @transform_0(%arg0: i32) -> (i32, i32, i32, i32) {
    %c0_i32 = arith.constant 0 : i32
    %c0_i32_0 = arith.constant 0 : i32
    %c0_i32_1 = arith.constant 0 : i32
    %c0_i32_2 = arith.constant 0 : i32
    return %arg0, %c0_i32, %c0_i32_0, %c0_i32_1 : i32, i32, i32, i32
  }
  func.func @transform_1(%arg0: i32) -> (i32, i32) {
    %c0_i32 = arith.constant 0 : i32
    %c0_i32_0 = arith.constant 0 : i32
    %c0_i32_1 = arith.constant 0 : i32
    return %c0_i32, %c0_i32_0 : i32, i32
  }
  func.func @transform_2(%arg0: i32) -> (i32, i32) {
    %c0_i32 = arith.constant 0 : i32
    %c0_i32_0 = arith.constant 0 : i32
    %c0_i32_1 = arith.constant 0 : i32
    return %c0_i32, %c0_i32_0 : i32, i32
  }
  func.func @transform_3(%arg0: i32) -> (i32, i32) {
    %c0_i32 = arith.constant 0 : i32
    %c0_i32_0 = arith.constant 0 : i32
    %c0_i32_1 = arith.constant 0 : i32
    return %c0_i32, %c0_i32_0 : i32, i32
  }
  func.func @transform_4(%arg0: i32) -> (i32, i32) {
    %c0_i32 = arith.constant 0 : i32
    %c0_i32_0 = arith.constant 0 : i32
    %c0_i32_1 = arith.constant 0 : i32
    return %c0_i32, %c0_i32_0 : i32, i32
  }
  func.func @transform_5(%arg0: i32) -> (i32, i32) {
    %c0_i32 = arith.constant 0 : i32
    %c0_i32_0 = arith.constant 0 : i32
    %c0_i32_1 = arith.constant 0 : i32
    return %c0_i32, %c0_i32_0 : i32, i32
  }
  func.func @transform_6(%arg0: i32) -> (i32, i32) {
    %c0_i32 = arith.constant 0 : i32
    %c0_i32_0 = arith.constant 0 : i32
    %c0_i32_1 = arith.constant 0 : i32
    return %c0_i32, %c0_i32_0 : i32, i32
  }
  func.func @transform_7(%arg0: i32) -> (i32, i32) {
    %c0_i32 = arith.constant 0 : i32
    %c0_i32_0 = arith.constant 0 : i32
    %c0_i32_1 = arith.constant 0 : i32
    return %c0_i32, %c0_i32_0 : i32, i32
  }
  func.func @transform_8(%arg0: i32) -> (i32, i32) {
    %c0_i32 = arith.constant 0 : i32
    %c0_i32_0 = arith.constant 0 : i32
    %c0_i32_1 = arith.constant 0 : i32
    return %c0_i32, %c0_i32_0 : i32, i32
  }
  func.func @transform_9(%arg0: i32) -> (i32, i32) {
    %c0_i32 = arith.constant 0 : i32
    %c0_i32_0 = arith.constant 0 : i32
    %c0_i32_1 = arith.constant 0 : i32
    return %c0_i32, %c0_i32_0 : i32, i32
  }
  func.func @transform_10(%arg0: i32) -> (i32, i32) {
    %c0_i32 = arith.constant 0 : i32
    %c0_i32_0 = arith.constant 0 : i32
    %c0_i32_1 = arith.constant 0 : i32
    return %c0_i32, %c0_i32_0 : i32, i32
  }
  func.func @transform_11(%arg0: i32) -> (i32, i32) {
    %c0_i32 = arith.constant 0 : i32
    %c0_i32_0 = arith.constant 0 : i32
    %c0_i32_1 = arith.constant 0 : i32
    return %c0_i32, %c0_i32_0 : i32, i32
  }
  func.func @transform_12(%arg0: i32) -> (i32, i32) {
    %c0_i32 = arith.constant 0 : i32
    %c0_i32_0 = arith.constant 0 : i32
    %c0_i32_1 = arith.constant 0 : i32
    return %c0_i32, %c0_i32_0 : i32, i32
  }
  func.func @transform_13(%arg0: i32) -> (i32, i32, i32, i32) {
    %c0_i32 = arith.constant 0 : i32
    %c0_i32_0 = arith.constant 0 : i32
    %c0_i32_1 = arith.constant 0 : i32
    %c0_i32_2 = arith.constant 0 : i32
    return %arg0, %c0_i32, %c0_i32_0, %c0_i32_1 : i32, i32, i32, i32
  }
}

</mosaic_0001>

<llo_original>
// kernel: residual_block_forward.1
$region0: #{residual_block_forward.1}
  #allocation0 [shape = 'u32[]', space=smem, size = 0x4, offset = 0x4, fixed_abs, tag = 'smem constant byte address 0x4 - core index']
  #allocation1 [shape = 'u32[72,128]{1,0:T(1,128)}', space=vmem, size = 0x9000, scoped, tag = 'internal scratch']
  #allocation2 [shape = 'bf16[2,10,10,4]{3,2,1,0:T(8,128)(2,1)}', space=vmem, size = 0x14000, scoped, tag = 'scratch operand']
  %s0 = inlined_call_operand.hbm [shape: f32[2,8,8,16], index: 0, kind: input, shape index: {}]
  %s1 = inlined_call_operand.vmem [shape: f32[1,16], index: 1, kind: input, shape index: {}]
  %s2 = inlined_call_operand.vmem [shape: f32[1,16], index: 2, kind: input, shape index: {}]
  %s3 = inlined_call_operand.vmem [shape: bf16[16,4], index: 3, kind: input, shape index: {}]
  %s4 = inlined_call_operand.vmem [shape: f32[1,4], index: 4, kind: input, shape index: {}]
  %s5 = inlined_call_operand.vmem [shape: f32[1,4], index: 5, kind: input, shape index: {}]
  %s6 = inlined_call_operand.vmem [shape: f32[1,4], index: 6, kind: input, shape index: {}]
  %s7 = inlined_call_operand.vmem [shape: bf16[36,4], index: 7, kind: input, shape index: {}]
  %s8 = inlined_call_operand.vmem [shape: f32[1,4], index: 8, kind: input, shape index: {}]
  %s9 = inlined_call_operand.vmem [shape: f32[1,4], index: 9, kind: input, shape index: {}]
  %s10 = inlined_call_operand.vmem [shape: f32[1,4], index: 10, kind: input, shape index: {}]
  %s11 = inlined_call_operand.vmem [shape: bf16[4,16], index: 11, kind: input, shape index: {}]
  %s12 = inlined_call_operand.vmem [shape: f32[1,16], index: 12, kind: input, shape index: {}]
  %s13 = inlined_call_operand.hbm [shape: f32[2,8,8,16], index: 13, kind: output, shape index: {}]
  %s14 = sld [smem:[#allocation0]]
  $region66: #{residual_block_forward.1} parent=0
    _
  %s16 = ssub.s32 1, %s14
  %s17 = scalar_select 0, %s16, %s14
  $region1: #{residual_block_forward.1} parent=0
    #allocation3 [shape = 'u8[65536]{0}', space=vmem, size = 0x10000, scoped, tag = 'input window, operand 0, single buffered']
    #allocation4 [shape = 's32[1]{0}', space=sflag, size = 0x4, scoped, tag = 'scoped memory for residual_block_forward.1']
    #allocation5 [shape = 's32[1]{0}', space=sflag, size = 0x4, scoped, tag = 'scoped memory for residual_block_forward.1']
    #allocation6 [shape = 'u8[65536]{0}', space=vmem, size = 0x10000, scoped, tag = 'output window, operand 0, single buffered']
    %18 = vsyncpa [#allocation4], 0
    %19 = vsyncpa [#allocation5], 0
    // Predicated region
    $region2: #{residual_block_forward.1} parent=1 // pred_check
      _
    $region3: #{residual_block_forward.1} parent=1 // pred_check_branch
      %21 = sbr.rel (0) target = $region5
    $region4: #{residual_block_forward.1} parent=1 // pred_region
      %23 = vsyncadd [#allocation4], 0
      %s24 = sshll.u32 %s0, 4
      %s25 = int_to_ptr.hbm [resolvable:$true] %s24
      %s26 = sshll.u32 [#allocation3], 4
      %s27 = int_to_ptr.vmem [resolvable:$true] %s26
      %32 = dma.hbm_to_vmem [thread:$0]  %s25, 2048, %s27, [#allocation4], 128, 128, 8
    $region5: #{residual_block_forward.1} parent=1 // pred_fallthru
      _
    // Predicated region
    $region6: #{residual_block_forward.1} parent=1 // pred_check
      _
    $region7: #{residual_block_forward.1} parent=1 // pred_check_branch
      %34 = sbr.rel (0) target = $region9
    $region8: #{residual_block_forward.1} parent=1 // pred_region
      _
    $region9: #{residual_block_forward.1} parent=1 // pred_fallthru
      _
    // Predicated region
    $region10: #{residual_block_forward.1} parent=1 // pred_check
      _
    $region11: #{residual_block_forward.1} parent=1 // pred_check_branch
      %36 = sbr.rel (0) target = $region13
    $region12: #{residual_block_forward.1} parent=1 // pred_region
      _
    $region13: #{residual_block_forward.1} parent=1 // pred_fallthru
      _
    // Predicated region
    $region14: #{residual_block_forward.1} parent=1 // pred_check
      _
    $region15: #{residual_block_forward.1} parent=1 // pred_check_branch
      %38 = sbr.rel (0) target = $region17
    $region16: #{residual_block_forward.1} parent=1 // pred_region
      _
    $region17: #{residual_block_forward.1} parent=1 // pred_fallthru
      _
    // Predicated region
    $region18: #{residual_block_forward.1} parent=1 // pred_check
      _
    $region19: #{residual_block_forward.1} parent=1 // pred_check_branch
      %40 = sbr.rel (0) target = $region21
    $region20: #{residual_block_forward.1} parent=1 // pred_region
      _
    $region21: #{residual_block_forward.1} parent=1 // pred_fallthru
      _
    // Predicated region
    $region22: #{residual_block_forward.1} parent=1 // pred_check
      _
    $region23: #{residual_block_forward.1} parent=1 // pred_check_branch
      %42 = sbr.rel (0) target = $region25
    $region24: #{residual_block_forward.1} parent=1 // pred_region
      _
    $region25: #{residual_block_forward.1} parent=1 // pred_fallthru
      _
    // Predicated region
    $region26: #{residual_block_forward.1} parent=1 // pred_check
      _
    $region27: #{residual_block_forward.1} parent=1 // pred_check_branch
      %44 = sbr.rel (0) target = $region29
    $region28: #{residual_block_forward.1} parent=1 // pred_region
      _
    $region29: #{residual_block_forward.1} parent=1 // pred_fallthru
      _
    // Predicated region
    $region30: #{residual_block_forward.1} parent=1 // pred_check
      _
    $region31: #{residual_block_forward.1} parent=1 // pred_check_branch
      %46 = sbr.rel (0) target = $region33
    $region32: #{residual_block_forward.1} parent=1 // pred_region
      _
    $region33: #{residual_block_forward.1} parent=1 // pred_fallthru
      _
    // Predicated region
    $region34: #{residual_block_forward.1} parent=1 // pred_check
      _
    $region35: #{residual_block_forward.1} parent=1 // pred_check_branch
      %48 = sbr.rel (0) target = $region37
    $region36: #{residual_block_forward.1} parent=1 // pred_region
      _
    $region37: #{residual_block_forward.1} parent=1 // pred_fallthru
      _
    // Predicated region
    $region38: #{residual_block_forward.1} parent=1 // pred_check
      _
    $region39: #{residual_block_forward.1} parent=1 // pred_check_branch
      %50 = sbr.rel (0) target = $region41
    $region40: #{residual_block_forward.1} parent=1 // pred_region
      _
    $region41: #{residual_block_forward.1} parent=1 // pred_fallthru
      _
    // Predicated region
    $region42: #{residual_block_forward.1} parent=1 // pred_check
      _
    $region43: #{residual_block_forward.1} parent=1 // pred_check_branch
      %52 = sbr.rel (0) target = $region45
    $region44: #{residual_block_forward.1} parent=1 // pred_region
      _
    $region45: #{residual_block_forward.1} parent=1 // pred_fallthru
      _
    // Predicated region
    $region46: #{residual_block_forward.1} parent=1 // pred_check
      _
    $region47: #{residual_block_forward.1} parent=1 // pred_check_branch
      %54 = sbr.rel (0) target = $region49
    $region48: #{residual_block_forward.1} parent=1 // pred_region
      _
    $region49: #{residual_block_forward.1} parent=1 // pred_fallthru
      _
    // Predicated region
    $region50: #{residual_block_forward.1} parent=1 // pred_check
      _
    $region51: #{residual_block_forward.1} parent=1 // pred_check_branch
      %56 = sbr.rel (0) target = $region53
    $region52: #{residual_block_forward.1} parent=1 // pred_region
      _
    $region53: #{residual_block_forward.1} parent=1 // pred_fallthru
      _
    // Predicated region
    $region54: #{residual_block_forward.1} parent=1 // pred_check
      _
    $region55: #{residual_block_forward.1} parent=1 // pred_check_branch
      %58 = sbr.rel (0) target = $region57
    $region56: #{residual_block_forward.1} parent=1 // pred_region
      %60 = dma.done [#allocation4], 2048
    $region57: #{residual_block_forward.1} parent=1 // pred_fallthru
      _
    %v62 = vld [vmem:[#allocation3] sm:$0xff]
    %v63 = vld [vmem:[#allocation3 + $0x8] sm:$0xff]
    %v64 = vld [vmem:[#allocation3 + $0x10] sm:$0xff]
    %v65 = vld [vmem:[#allocation3 + $0x18] sm:$0xff]
    %v66 = vld [vmem:[#allocation3 + $0x20] sm:$0xff]
    %v67 = vld [vmem:[#allocation3 + $0x28] sm:$0xff]
    %v68 = vld [vmem:[#allocation3 + $0x30] sm:$0xff]
    %v69 = vld [vmem:[#allocation3 + $0x38] sm:$0xff]
    %v70 = vld [vmem:[#allocation3 + $0x40] sm:$0xff]
    %v71 = vld [vmem:[#allocation3 + $0x48] sm:$0xff]
    %v72 = vld [vmem:[#allocation3 + $0x50] sm:$0xff]
    %v73 = vld [vmem:[#allocation3 + $0x58] sm:$0xff]
    %v74 = vld [vmem:[#allocation3 + $0x60] sm:$0xff]
    %v75 = vld [vmem:[#allocation3 + $0x68] sm:$0xff]
    %v76 = vld [vmem:[#allocation3 + $0x70] sm:$0xff]
    %v77 = vld [vmem:[#allocation3 + $0x78] sm:$0xff]
    %v78 = vld [vmem:[%s1] sm:$0x1]
    %v80 = vperm.slane %v78, 0
    %v82 = vmul.f32 %v62, %v80
    %v83 = vmul.f32 %v63, %v80
    %v84 = vmul.f32 %v64, %v80
    %v85 = vmul.f32 %v65, %v80
    %v86 = vmul.f32 %v66, %v80
    %v87 = vmul.f32 %v67, %v80
    %v88 = vmul.f32 %v68, %v80
    %v89 = vmul.f32 %v69, %v80
    %v90 = vmul.f32 %v70, %v80
    %v91 = vmul.f32 %v71, %v80
    %v92 = vmul.f32 %v72, %v80
    %v93 = vmul.f32 %v73, %v80
    %v94 = vmul.f32 %v74, %v80
    %v95 = vmul.f32 %v75, %v80
    %v96 = vmul.f32 %v76, %v80
    %v97 = vmul.f32 %v77, %v80
    %v98 = vld [vmem:[%s2] sm:$0x1]
    %v100 = vperm.slane %v98, 0
    %v102 = vadd.f32 %v82, %v100
    %v103 = vadd.f32 %v83, %v100
    %v104 = vadd.f32 %v84, %v100
    %v105 = vadd.f32 %v85, %v100
    %v106 = vadd.f32 %v86, %v100
    %v107 = vadd.f32 %v87, %v100
    %v108 = vadd.f32 %v88, %v100
    %v109 = vadd.f32 %v89, %v100
    %v110 = vadd.f32 %v90, %v100
    %v111 = vadd.f32 %v91, %v100
    %v112 = vadd.f32 %v92, %v100
    %v113 = vadd.f32 %v93, %v100
    %v114 = vadd.f32 %v94, %v100
    %v115 = vadd.f32 %v95, %v100
    %v116 = vadd.f32 %v96, %v100
    %v117 = vadd.f32 %v97, %v100
    %v118 = vmax.f32 %v102, 0.0
    %v119 = vmax.f32 %v103, 0.0
    %v120 = vmax.f32 %v104, 0.0
    %v121 = vmax.f32 %v105, 0.0
    %v122 = vmax.f32 %v106, 0.0
    %v123 = vmax.f32 %v107, 0.0
    %v124 = vmax.f32 %v108, 0.0
    %v125 = vmax.f32 %v109, 0.0
    %v126 = vmax.f32 %v110, 0.0
    %v127 = vmax.f32 %v111, 0.0
    %v128 = vmax.f32 %v112, 0.0
    %v129 = vmax.f32 %v113, 0.0
    %v130 = vmax.f32 %v114, 0.0
    %v131 = vmax.f32 %v115, 0.0
    %v132 = vmax.f32 %v116, 0.0
    %v133 = vmax.f32 %v117, 0.0
    %v134 = vpack.c.bf16 %v119, %v118
    %v135 = vpack.c.bf16 %v121, %v120
    %v136 = vpack.c.bf16 %v123, %v122
    %v137 = vpack.c.bf16 %v125, %v124
    %v138 = vpack.c.bf16 %v127, %v126
    %v139 = vpack.c.bf16 %v129, %v128
    %v140 = vpack.c.bf16 %v131, %v130
    %v141 = vpack.c.bf16 %v133, %v132
    %v142 = vld [vmem:[%s3] sm:$0xf]
    %v143 = vld [vmem:[%s3 + $0x4] sm:$0xf]
    %v144 = vld [vmem:[%s4] sm:$0x1]
    %v146 = vperm.slane %v144, 0
    %v150 = vunpack.c.l.b16 %v142
    %v151 = vunpack.c.l.b16 %v143
    %v152 = vpack.c.b16 %v151, %v150
    %vm154 = vcmask 130048
    %v156 = vsel %vm154, %v134, 0
    %v159 = vsel %vm154, %v135, 0
    %v162 = vsel %vm154, %v136, 0
    %v165 = vsel %vm154, %v137, 0
    %v168 = vsel %vm154, %v138, 0
    %v171 = vsel %vm154, %v139, 0
    %v174 = vsel %vm154, %v140, 0
    %v177 = vsel %vm154, %v141, 0
    %179 = vmatpush.bf16.msra.mxu0 0
    %180 = vmatpush.bf16.msra.mxu0 0
    %181 = vmatpush.bf16.msra.mxu0 0
    %182 = vmatpush.bf16.msra.mxu0 0
    %183 = vmatpush.bf16.msra.mxu0 0
    %184 = vmatpush.bf16.msra.mxu0 0
    %185 = vmatpush.bf16.msra.mxu0 0
    %186 = vmatpush.bf16.msra.mxu0 %v152
    %187 = vmatmul.bf16.gmra.mxu0 %v156
    %v188 = vpop.f32.mrf.mxu0
    %v189 = vadd.f32 %v146, %v188
    %v190 = vpop.f32.mrf.mxu0
    %v191 = vadd.f32 %v146, %v190
    %192 = vmatmul.bf16.gmra.mxu0 %v159
    %v193 = vpop.f32.mrf.mxu0
    %v194 = vadd.f32 %v146, %v193
    %v195 = vpop.f32.mrf.mxu0
    %v196 = vadd.f32 %v146, %v195
    %197 = vmatmul.bf16.gmra.mxu0 %v162
    %v198 = vpop.f32.mrf.mxu0
    %v199 = vadd.f32 %v146, %v198
    %v200 = vpop.f32.mrf.mxu0
    %v201 = vadd.f32 %v146, %v200
    %202 = vmatmul.bf16.gmra.mxu0 %v165
    %v203 = vpop.f32.mrf.mxu0
    %v204 = vadd.f32 %v146, %v203
    %v205 = vpop.f32.mrf.mxu0
    %v206 = vadd.f32 %v146, %v205
    %207 = vmatmul.bf16.gmra.mxu0 %v168
    %v208 = vpop.f32.mrf.mxu0
    %v209 = vadd.f32 %v146, %v208
    %v210 = vpop.f32.mrf.mxu0
    %v211 = vadd.f32 %v146, %v210
    %212 = vmatmul.bf16.gmra.mxu0 %v171
    %v213 = vpop.f32.mrf.mxu0
    %v214 = vadd.f32 %v146, %v213
    %v215 = vpop.f32.mrf.mxu0
    %v216 = vadd.f32 %v146, %v215
    %217 = vmatmul.bf16.gmra.mxu0 %v174
    %v218 = vpop.f32.mrf.mxu0
    %v219 = vadd.f32 %v146, %v218
    %v220 = vpop.f32.mrf.mxu0
    %v221 = vadd.f32 %v146, %v220
    %222 = vmatmul.bf16.gmra.mxu0 %v177
    %v223 = vpop.f32.mrf.mxu0
    %v224 = vadd.f32 %v146, %v223
    %v225 = vpop.f32.mrf.mxu0
    %v226 = vadd.f32 %v146, %v225
    %227 = vdwg.mxu0
    %v228 = vld [vmem:[%s5] sm:$0x1]
    %v230 = vperm.slane %v228, 0
    %v232 = vmul.f32 %v189, %v230
    %v233 = vmul.f32 %v191, %v230
    %v234 = vmul.f32 %v194, %v230
    %v235 = vmul.f32 %v196, %v230
    %v236 = vmul.f32 %v199, %v230
    %v237 = vmul.f32 %v201, %v230
    %v238 = vmul.f32 %v204, %v230
    %v239 = vmul.f32 %v206, %v230
    %v240 = vmul.f32 %v209, %v230
    %v241 = vmul.f32 %v211, %v230
    %v242 = vmul.f32 %v214, %v230
    %v243 = vmul.f32 %v216, %v230
    %v244 = vmul.f32 %v219, %v230
    %v245 = vmul.f32 %v221, %v230
    %v246 = vmul.f32 %v224, %v230
    %v247 = vmul.f32 %v226, %v230
    %v248 = vld [vmem:[%s6] sm:$0x1]
    %v250 = vperm.slane %v248, 0
    %v252 = vadd.f32 %v232, %v250
    %v253 = vadd.f32 %v233, %v250
    %v254 = vadd.f32 %v234, %v250
    %v255 = vadd.f32 %v235, %v250
    %v256 = vadd.f32 %v236, %v250
    %v257 = vadd.f32 %v237, %v250
    %v258 = vadd.f32 %v238, %v250
    %v259 = vadd.f32 %v239, %v250
    %v260 = vadd.f32 %v240, %v250
    %v261 = vadd.f32 %v241, %v250
    %v262 = vadd.f32 %v242, %v250
    %v263 = vadd.f32 %v243, %v250
    %v264 = vadd.f32 %v244, %v250
    %v265 = vadd.f32 %v245, %v250
    %v266 = vadd.f32 %v246, %v250
    %v267 = vadd.f32 %v247, %v250
    %v268 = vmax.f32 %v252, 0.0
    %v269 = vmax.f32 %v253, 0.0
    %v270 = vmax.f32 %v254, 0.0
    %v271 = vmax.f32 %v255, 0.0
    %v272 = vmax.f32 %v256, 0.0
    %v273 = vmax.f32 %v257, 0.0
    %v274 = vmax.f32 %v258, 0.0
    %v275 = vmax.f32 %v259, 0.0
    %v276 = vmax.f32 %v260, 0.0
    %v277 = vmax.f32 %v261, 0.0
    %v278 = vmax.f32 %v262, 0.0
    %v279 = vmax.f32 %v263, 0.0
    %v280 = vmax.f32 %v264, 0.0
    %v281 = vmax.f32 %v265, 0.0
    %v282 = vmax.f32 %v266, 0.0
    %v283 = vmax.f32 %v267, 0.0
    %vm284 = vcmask 27648
    %285 = vst.msk [vmem:[#allocation2] sm:$0xf] %vm284, 0
    %vm286 = vcmask 24576
    %287 = vst.msk [vmem:[#allocation2 + $0x4] sm:$0x1] %vm286, 0
    %288 = vst.msk [vmem:[#allocation2 + $0x50] sm:$0xf] %vm284, 0
    %289 = vst.msk [vmem:[#allocation2 + $0x54] sm:$0x1] %vm286, 0
    %s290 = scalar_lea.vmem [#allocation2], 72
    %291 = vst.msk [vmem:[%s290] sm:$0xf] %vm284, 0
    %292 = vst.msk [vmem:[%s290 + $0x4] sm:$0x1] %vm286, 0
    %293 = vst.msk [vmem:[%s290 + $0x50] sm:$0xf] %vm284, 0
    %294 = vst.msk [vmem:[%s290 + $0x54] sm:$0x1] %vm286, 0
    %vm295 = vcmask 24576
    %vm296 = vsmask.f32 256
    %vm297 = vmand %vm295, %vm296
    %v298 = vld [vmem:[#allocation2] sm:$0x1]
    %v299 = vsel %vm297, 0, %v298
    %300 = vst [vmem:[#allocation2] sm:$0x1] %v299
    %v301 = vld [vmem:[#allocation2 + $0x8] sm:$0x1]
    %v302 = vsel %vm297, 0, %v301
    %303 = vst [vmem:[#allocation2 + $0x8] sm:$0x1] %v302
    %v304 = vld [vmem:[#allocation2 + $0x10] sm:$0x1]
    %v305 = vsel %vm297, 0, %v304
    %306 = vst [vmem:[#allocation2 + $0x10] sm:$0x1] %v305
    %v307 = vld [vmem:[#allocation2 + $0x18] sm:$0x1]
    %v308 = vsel %vm297, 0, %v307
    %309 = vst [vmem:[#allocation2 + $0x18] sm:$0x1] %v308
    %v310 = vld [vmem:[#allocation2 + $0x20] sm:$0x1]
    %v311 = vsel %vm297, 0, %v310
    %312 = vst [vmem:[#allocation2 + $0x20] sm:$0x1] %v311
    %v313 = vld [vmem:[#allocation2 + $0x28] sm:$0x1]
    %v314 = vsel %vm297, 0, %v313
    %315 = vst [vmem:[#allocation2 + $0x28] sm:$0x1] %v314
    %v316 = vld [vmem:[#allocation2 + $0x30] sm:$0x1]
    %v317 = vsel %vm297, 0, %v316
    %318 = vst [vmem:[#allocation2 + $0x30] sm:$0x1] %v317
    %v319 = vld [vmem:[#allocation2 + $0x38] sm:$0x1]
    %v320 = vsel %vm297, 0, %v319
    %321 = vst [vmem:[#allocation2 + $0x38] sm:$0x1] %v320
    %v322 = vld [vmem:[#allocation2 + $0x40] sm:$0x1]
    %v323 = vsel %vm297, 0, %v322
    %324 = vst [vmem:[#allocation2 + $0x40] sm:$0x1] %v323
    %v325 = vld [vmem:[#allocation2 + $0x48] sm:$0x1]
    %v326 = vsel %vm297, 0, %v325
    %327 = vst [vmem:[#allocation2 + $0x48] sm:$0x1] %v326
    %v328 = vld [vmem:[#allocation2 + $0x50] sm:$0x1]
    %v329 = vsel %vm297, 0, %v328
    %330 = vst [vmem:[#allocation2 + $0x50] sm:$0x1] %v329
    %v331 = vld [vmem:[#allocation2 + $0x58] sm:$0x1]
    %v332 = vsel %vm297, 0, %v331
    %333 = vst [vmem:[#allocation2 + $0x58] sm:$0x1] %v332
    %v334 = vld [vmem:[#allocation2 + $0x60] sm:$0x1]
    %v335 = vsel %vm297, 0, %v334
    %336 = vst [vmem:[#allocation2 + $0x60] sm:$0x1] %v335
    %v337 = vld [vmem:[#allocation2 + $0x68] sm:$0x1]
    %v338 = vsel %vm297, 0, %v337
    %339 = vst [vmem:[#allocation2 + $0x68] sm:$0x1] %v338
    %v340 = vld [vmem:[#allocation2 + $0x70] sm:$0x1]
    %v341 = vsel %vm297, 0, %v340
    %342 = vst [vmem:[#allocation2 + $0x70] sm:$0x1] %v341
    %v343 = vld [vmem:[#allocation2 + $0x78] sm:$0x1]
    %v344 = vsel %vm297, 0, %v343
    %345 = vst [vmem:[#allocation2 + $0x78] sm:$0x1] %v344
    %v346 = vld [vmem:[#allocation2 + $0x80] sm:$0x1]
    %v347 = vsel %vm297, 0, %v346
    %348 = vst [vmem:[#allocation2 + $0x80] sm:$0x1] %v347
    %v349 = vld [vmem:[#allocation2 + $0x88] sm:$0x1]
    %v350 = vsel %vm297, 0, %v349
    %351 = vst [vmem:[#allocation2 + $0x88] sm:$0x1] %v350
    %v352 = vld [vmem:[#allocation2 + $0x90] sm:$0x1]
    %v353 = vsel %vm297, 0, %v352
    %354 = vst [vmem:[#allocation2 + $0x90] sm:$0x1] %v353
    %v355 = vld [vmem:[#allocation2 + $0x98] sm:$0x1]
    %v356 = vsel %vm297, 0, %v355
    %357 = vst [vmem:[#allocation2 + $0x98] sm:$0x1] %v356
    %vm358 = vsmask.f32 7938
    %vm359 = vmand %vm295, %vm358
    %v360 = vld [vmem:[#allocation2 + $0x4] sm:$0x1]
    %v361 = vsel %vm359, 0, %v360
    %362 = vst [vmem:[#allocation2 + $0x4] sm:$0x1] %v361
    %v363 = vld [vmem:[#allocation2 + $0xc] sm:$0x1]
    %v364 = vsel %vm359, 0, %v363
    %365 = vst [vmem:[#allocation2 + $0xc] sm:$0x1] %v364
    %v366 = vld [vmem:[#allocation2 + $0x14] sm:$0x1]
    %v367 = vsel %vm359, 0, %v366
    %368 = vst [vmem:[#allocation2 + $0x14] sm:$0x1] %v367
    %v369 = vld [vmem:[#allocation2 + $0x1c] sm:$0x1]
    %v370 = vsel %vm359, 0, %v369
    %371 = vst [vmem:[#allocation2 + $0x1c] sm:$0x1] %v370
    %v372 = vld [vmem:[#allocation2 + $0x24] sm:$0x1]
    %v373 = vsel %vm359, 0, %v372
    %374 = vst [vmem:[#allocation2 + $0x24] sm:$0x1] %v373
    %v375 = vld [vmem:[#allocation2 + $0x2c] sm:$0x1]
    %v376 = vsel %vm359, 0, %v375
    %377 = vst [vmem:[#allocation2 + $0x2c] sm:$0x1] %v376
    %v378 = vld [vmem:[#allocation2 + $0x34] sm:$0x1]
    %v379 = vsel %vm359, 0, %v378
    %380 = vst [vmem:[#allocation2 + $0x34] sm:$0x1] %v379
    %v381 = vld [vmem:[#allocation2 + $0x3c] sm:$0x1]
    %v382 = vsel %vm359, 0, %v381
    %383 = vst [vmem:[#allocation2 + $0x3c] sm:$0x1] %v382
    %v384 = vld [vmem:[#allocation2 + $0x44] sm:$0x1]
    %v385 = vsel %vm359, 0, %v384
    %386 = vst [vmem:[#allocation2 + $0x44] sm:$0x1] %v385
    %v387 = vld [vmem:[#allocation2 + $0x4c] sm:$0x1]
    %v388 = vsel %vm359, 0, %v387
    %389 = vst [vmem:[#allocation2 + $0x4c] sm:$0x1] %v388
    %v390 = vld [vmem:[#allocation2 + $0x54] sm:$0x1]
    %v391 = vsel %vm359, 0, %v390
    %392 = vst [vmem:[#allocation2 + $0x54] sm:$0x1] %v391
    %v393 = vld [vmem:[#allocation2 + $0x5c] sm:$0x1]
    %v394 = vsel %vm359, 0, %v393
    %395 = vst [vmem:[#allocation2 + $0x5c] sm:$0x1] %v394
    %v396 = vld [vmem:[#allocation2 + $0x64] sm:$0x1]
    %v397 = vsel %vm359, 0, %v396
    %398 = vst [vmem:[#allocation2 + $0x64] sm:$0x1] %v397
    %v399 = vld [vmem:[#allocation2 + $0x6c] sm:$0x1]
    %v400 = vsel %vm359, 0, %v399
    %401 = vst [vmem:[#allocation2 + $0x6c] sm:$0x1] %v400
    %v402 = vld [vmem:[#allocation2 + $0x74] sm:$0x1]
    %v403 = vsel %vm359, 0, %v402
    %404 = vst [vmem:[#allocation2 + $0x74] sm:$0x1] %v403
    %v405 = vld [vmem:[#allocation2 + $0x7c] sm:$0x1]
    %v406 = vsel %vm359, 0, %v405
    %407 = vst [vmem:[#allocation2 + $0x7c] sm:$0x1] %v406
    %v408 = vld [vmem:[#allocation2 + $0x84] sm:$0x1]
    %v409 = vsel %vm359, 0, %v408
    %410 = vst [vmem:[#allocation2 + $0x84] sm:$0x1] %v409
    %v411 = vld [vmem:[#allocation2 + $0x8c] sm:$0x1]
    %v412 = vsel %vm359, 0, %v411
    %413 = vst [vmem:[#allocation2 + $0x8c] sm:$0x1] %v412
    %v414 = vld [vmem:[#allocation2 + $0x94] sm:$0x1]
    %v415 = vsel %vm359, 0, %v414
    %416 = vst [vmem:[#allocation2 + $0x94] sm:$0x1] %v415
    %v417 = vld [vmem:[#allocation2 + $0x9c] sm:$0x1]
    %v418 = vsel %vm359, 0, %v417
    %419 = vst [vmem:[#allocation2 + $0x9c] sm:$0x1] %v418
    %v420 = vpack.c.bf16 %v268, %v268
    %v421 = vpack.c.bf16 %v269, %v269
    %v422 = vpack.c.bf16 %v270, %v270
    %v423 = vpack.c.bf16 %v271, %v271
    %v424 = vpack.c.bf16 %v272, %v272
    %v425 = vpack.c.bf16 %v273, %v273
    %v426 = vpack.c.bf16 %v274, %v274
    %v427 = vpack.c.bf16 %v275, %v275
    %v428 = vpack.c.bf16 %v276, %v276
    %v429 = vpack.c.bf16 %v277, %v277
    %v430 = vpack.c.bf16 %v278, %v278
    %v431 = vpack.c.bf16 %v279, %v279
    %v432 = vpack.c.bf16 %v280, %v280
    %v433 = vpack.c.bf16 %v281, %v281
    %v434 = vpack.c.bf16 %v282, %v282
    %v435 = vpack.c.bf16 %v283, %v283
    %v437 = vshrl.u32 %v420, 16
    %v439 = vrot.slane %v437, 7
    %v440 = vshll.u32 %v420, 16
    %v442 = vor.u32 %v439, %v440
    %v443 = vrot.slane %v439, 4
    %v445 = vshrl.u32 %v421, 16
    %v447 = vrot.slane %v445, 7
    %v448 = vshll.u32 %v421, 16
    %v450 = vor.u32 %v447, %v448
    %v451 = vrot.slane %v447, 4
    %v453 = vshrl.u32 %v422, 16
    %v455 = vrot.slane %v453, 7
    %v456 = vshll.u32 %v422, 16
    %v458 = vor.u32 %v455, %v456
    %v459 = vrot.slane %v455, 4
    %v461 = vshrl.u32 %v423, 16
    %v463 = vrot.slane %v461, 7
    %v464 = vshll.u32 %v423, 16
    %v466 = vor.u32 %v463, %v464
    %v467 = vrot.slane %v463, 4
    %v469 = vshrl.u32 %v424, 16
    %v471 = vrot.slane %v469, 7
    %v472 = vshll.u32 %v424, 16
    %v474 = vor.u32 %v471, %v472
    %v475 = vrot.slane %v471, 4
    %v477 = vshrl.u32 %v425, 16
    %v479 = vrot.slane %v477, 7
    %v480 = vshll.u32 %v425, 16
    %v482 = vor.u32 %v479, %v480
    %v483 = vrot.slane %v479, 4
    %v485 = vshrl.u32 %v426, 16
    %v487 = vrot.slane %v485, 7
    %v488 = vshll.u32 %v426, 16
    %v490 = vor.u32 %v487, %v488
    %v491 = vrot.slane %v487, 4
    %v493 = vshrl.u32 %v427, 16
    %v495 = vrot.slane %v493, 7
    %v496 = vshll.u32 %v427, 16
    %v498 = vor.u32 %v495, %v496
    %v499 = vrot.slane %v495, 4
    %v501 = vshrl.u32 %v428, 16
    %v503 = vrot.slane %v501, 7
    %v504 = vshll.u32 %v428, 16
    %v506 = vor.u32 %v503, %v504
    %v507 = vrot.slane %v503, 4
    %v509 = vshrl.u32 %v429, 16
    %v511 = vrot.slane %v509, 7
    %v512 = vshll.u32 %v429, 16
    %v514 = vor.u32 %v511, %v512
    %v515 = vrot.slane %v511, 4
    %v517 = vshrl.u32 %v430, 16
    %v519 = vrot.slane %v517, 7
    %v520 = vshll.u32 %v430, 16
    %v522 = vor.u32 %v519, %v520
    %v523 = vrot.slane %v519, 4
    %v525 = vshrl.u32 %v431, 16
    %v527 = vrot.slane %v525, 7
    %v528 = vshll.u32 %v431, 16
    %v530 = vor.u32 %v527, %v528
    %v531 = vrot.slane %v527, 4
    %v533 = vshrl.u32 %v432, 16
    %v535 = vrot.slane %v533, 7
    %v536 = vshll.u32 %v432, 16
    %v538 = vor.u32 %v535, %v536
    %v539 = vrot.slane %v535, 4
    %v541 = vshrl.u32 %v433, 16
    %v543 = vrot.slane %v541, 7
    %v544 = vshll.u32 %v433, 16
    %v546 = vor.u32 %v543, %v544
    %v547 = vrot.slane %v543, 4
    %v549 = vshrl.u32 %v434, 16
    %v551 = vrot.slane %v549, 7
    %v552 = vshll.u32 %v434, 16
    %v554 = vor.u32 %v551, %v552
    %v555 = vrot.slane %v551, 4
    %v557 = vshrl.u32 %v435, 16
    %v559 = vrot.slane %v557, 7
    %v560 = vshll.u32 %v435, 16
    %v562 = vor.u32 %v559, %v560
    %v563 = vrot.slane %v559, 4
    %s596 = scalar_lea.vmem [#allocation2], 8
    %vm597 = vcmask 27648
    %vm598 = vmand %vm597, %vm358
    %v599 = vld [vmem:[%s596] sm:$0xf]
    %v600 = vsel %vm598, %v442, %v599
    %601 = vst [vmem:[%s596] sm:$0xf] %v600
    %v602 = vld [vmem:[%s596 + $0x4] sm:$0x1]
    %v603 = vsel %vm297, %v443, %v602
    %604 = vst [vmem:[%s596 + $0x4] sm:$0x1] %v603
    %v605 = vld [vmem:[%s596 + $0x8] sm:$0xf]
    %v606 = vsel %vm598, %v450, %v605
    %607 = vst [vmem:[%s596 + $0x8] sm:$0xf] %v606
    %v608 = vld [vmem:[%s596 + $0xc] sm:$0x1]
    %v609 = vsel %vm297, %v451, %v608
    %610 = vst [vmem:[%s596 + $0xc] sm:$0x1] %v609
    %v611 = vld [vmem:[%s596 + $0x10] sm:$0xf]
    %v612 = vsel %vm598, %v458, %v611
    %613 = vst [vmem:[%s596 + $0x10] sm:$0xf] %v612
    %v614 = vld [vmem:[%s596 + $0x14] sm:$0x1]
    %v615 = vsel %vm297, %v459, %v614
    %616 = vst [vmem:[%s596 + $0x14] sm:$0x1] %v615
    %v617 = vld [vmem:[%s596 + $0x18] sm:$0xf]
    %v618 = vsel %vm598, %v466, %v617
    %619 = vst [vmem:[%s596 + $0x18] sm:$0xf] %v618
    %v620 = vld [vmem:[%s596 + $0x1c] sm:$0x1]
    %v621 = vsel %vm297, %v467, %v620
    %622 = vst [vmem:[%s596 + $0x1c] sm:$0x1] %v621
    %v623 = vld [vmem:[%s596 + $0x20] sm:$0xf]
    %v624 = vsel %vm598, %v474, %v623
    %625 = vst [vmem:[%s596 + $0x20] sm:$0xf] %v624
    %v626 = vld [vmem:[%s596 + $0x24] sm:$0x1]
    %v627 = vsel %vm297, %v475, %v626
    %628 = vst [vmem:[%s596 + $0x24] sm:$0x1] %v627
    %v629 = vld [vmem:[%s596 + $0x28] sm:$0xf]
    %v630 = vsel %vm598, %v482, %v629
    %631 = vst [vmem:[%s596 + $0x28] sm:$0xf] %v630
    %v632 = vld [vmem:[%s596 + $0x2c] sm:$0x1]
    %v633 = vsel %vm297, %v483, %v632
    %634 = vst [vmem:[%s596 + $0x2c] sm:$0x1] %v633
    %v635 = vld [vmem:[%s596 + $0x30] sm:$0xf]
    %v636 = vsel %vm598, %v490, %v635
    %637 = vst [vmem:[%s596 + $0x30] sm:$0xf] %v636
    %v638 = vld [vmem:[%s596 + $0x34] sm:$0x1]
    %v639 = vsel %vm297, %v491, %v638
    %640 = vst [vmem:[%s596 + $0x34] sm:$0x1] %v639
    %v641 = vld [vmem:[%s596 + $0x38] sm:$0xf]
    %v642 = vsel %vm598, %v498, %v641
    %643 = vst [vmem:[%s596 + $0x38] sm:$0xf] %v642
    %v644 = vld [vmem:[%s596 + $0x3c] sm:$0x1]
    %v645 = vsel %vm297, %v499, %v644
    %646 = vst [vmem:[%s596 + $0x3c] sm:$0x1] %v645
    %v647 = vld [vmem:[%s596 + $0x50] sm:$0xf]
    %v648 = vsel %vm598, %v506, %v647
    %649 = vst [vmem:[%s596 + $0x50] sm:$0xf] %v648
    %v650 = vld [vmem:[%s596 + $0x54] sm:$0x1]
    %v651 = vsel %vm297, %v507, %v650
    %652 = vst [vmem:[%s596 + $0x54] sm:$0x1] %v651
    %v653 = vld [vmem:[%s596 + $0x58] sm:$0xf]
    %v654 = vsel %vm598, %v514, %v653
    %655 = vst [vmem:[%s596 + $0x58] sm:$0xf] %v654
    %v656 = vld [vmem:[%s596 + $0x5c] sm:$0x1]
    %v657 = vsel %vm297, %v515, %v656
    %658 = vst [vmem:[%s596 + $0x5c] sm:$0x1] %v657
    %v659 = vld [vmem:[%s596 + $0x60] sm:$0xf]
    %v660 = vsel %vm598, %v522, %v659
    %661 = vst [vmem:[%s596 + $0x60] sm:$0xf] %v660
    %v662 = vld [vmem:[%s596 + $0x64] sm:$0x1]
    %v663 = vsel %vm297, %v523, %v662
    %664 = vst [vmem:[%s596 + $0x64] sm:$0x1] %v663
    %v665 = vld [vmem:[%s596 + $0x68] sm:$0xf]
    %v666 = vsel %vm598, %v530, %v665
    %667 = vst [vmem:[%s596 + $0x68] sm:$0xf] %v666
    %v668 = vld [vmem:[%s596 + $0x6c] sm:$0x1]
    %v669 = vsel %vm297, %v531, %v668
    %670 = vst [vmem:[%s596 + $0x6c] sm:$0x1] %v669
    %v671 = vld [vmem:[%s596 + $0x70] sm:$0xf]
    %v672 = vsel %vm598, %v538, %v671
    %673 = vst [vmem:[%s596 + $0x70] sm:$0xf] %v672
    %v674 = vld [vmem:[%s596 + $0x74] sm:$0x1]
    %v675 = vsel %vm297, %v539, %v674
    %676 = vst [vmem:[%s596 + $0x74] sm:$0x1] %v675
    %v677 = vld [vmem:[%s596 + $0x78] sm:$0xf]
    %v678 = vsel %vm598, %v546, %v677
    %679 = vst [vmem:[%s596 + $0x78] sm:$0xf] %v678
    %v680 = vld [vmem:[%s596 + $0x7c] sm:$0x1]
    %v681 = vsel %vm297, %v547, %v680
    %682 = vst [vmem:[%s596 + $0x7c] sm:$0x1] %v681
    %v683 = vld [vmem:[%s596 + $0x80] sm:$0xf]
    %v684 = vsel %vm598, %v554, %v683
    %685 = vst [vmem:[%s596 + $0x80] sm:$0xf] %v684
    %v686 = vld [vmem:[%s596 + $0x84] sm:$0x1]
    %v687 = vsel %vm297, %v555, %v686
    %688 = vst [vmem:[%s596 + $0x84] sm:$0x1] %v687
    %v689 = vld [vmem:[%s596 + $0x88] sm:$0xf]
    %v690 = vsel %vm598, %v562, %v689
    %691 = vst [vmem:[%s596 + $0x88] sm:$0xf] %v690
    %v692 = vld [vmem:[%s596 + $0x8c] sm:$0x1]
    %v693 = vsel %vm297, %v563, %v692
    %694 = vst [vmem:[%s596 + $0x8c] sm:$0x1] %v693
    %v695 = vld [vmem:[#allocation2] sm:$0xf]
    %v696 = vld [vmem:[#allocation2 + $0x8] sm:$0xf]
    %v697 = vld [vmem:[#allocation2 + $0x10] sm:$0xf]
    %v698 = vld [vmem:[#allocation2 + $0x18] sm:$0xf]
    %v699 = vld [vmem:[#allocation2 + $0x20] sm:$0xf]
    %v700 = vld [vmem:[#allocation2 + $0x28] sm:$0xf]
    %v701 = vld [vmem:[#allocation2 + $0x30] sm:$0xf]
    %v702 = vld [vmem:[#allocation2 + $0x38] sm:$0xf]
    %v703 = vld [vmem:[#allocation2 + $0x50] sm:$0xf]
    %v704 = vld [vmem:[#allocation2 + $0x58] sm:$0xf]
    %v705 = vld [vmem:[#allocation2 + $0x60] sm:$0xf]
    %v706 = vld [vmem:[#allocation2 + $0x68] sm:$0xf]
    %v707 = vld [vmem:[#allocation2 + $0x70] sm:$0xf]
    %v708 = vld [vmem:[#allocation2 + $0x78] sm:$0xf]
    %v709 = vld [vmem:[#allocation2 + $0x80] sm:$0xf]
    %v710 = vld [vmem:[#allocation2 + $0x88] sm:$0xf]
    %v711 = vld [vmem:[#allocation2 + $0x4] sm:$0x1]
    %v712 = vld [vmem:[#allocation2 + $0xc] sm:$0x1]
    %v713 = vld [vmem:[#allocation2 + $0x14] sm:$0x1]
    %v714 = vld [vmem:[#allocation2 + $0x1c] sm:$0x1]
    %v715 = vld [vmem:[#allocation2 + $0x24] sm:$0x1]
    %v716 = vld [vmem:[#allocation2 + $0x2c] sm:$0x1]
    %v717 = vld [vmem:[#allocation2 + $0x34] sm:$0x1]
    %v718 = vld [vmem:[#allocation2 + $0x3c] sm:$0x1]
    %v719 = vld [vmem:[#allocation2 + $0x54] sm:$0x1]
    %v720 = vld [vmem:[#allocation2 + $0x5c] sm:$0x1]
    %v721 = vld [vmem:[#allocation2 + $0x64] sm:$0x1]
    %v722 = vld [vmem:[#allocation2 + $0x6c] sm:$0x1]
    %v723 = vld [vmem:[#allocation2 + $0x74] sm:$0x1]
    %v724 = vld [vmem:[#allocation2 + $0x7c] sm:$0x1]
    %v725 = vld [vmem:[#allocation2 + $0x84] sm:$0x1]
    %v726 = vld [vmem:[#allocation2 + $0x8c] sm:$0x1]
    %vm727 = vsmask.f32 3328
    %vm728 = vsmask.f32 7440
    %vm729 = vmor %vm727, %vm728
    %v731 = vshrl.u32 %v695, 16
    %v733 = vrot.slane %v731, 4
    %v734 = vshll.u32 %v695, 16
    %v736 = vrot.slane %v734, 5
    %v737 = vor.u32 %v733, %v736
    %v738 = vrot.slane %v737, 4
    %v740 = vshll.u32 %v711, 16
    %v742 = vrot.slane %v740, 5
    %v743 = vsel %vm729, %v738, %v742
    %v745 = vshrl.u32 %v696, 16
    %v747 = vrot.slane %v745, 4
    %v748 = vshll.u32 %v696, 16
    %v750 = vrot.slane %v748, 5
    %v751 = vor.u32 %v747, %v750
    %v752 = vrot.slane %v751, 4
    %v754 = vshll.u32 %v712, 16
    %v756 = vrot.slane %v754, 5
    %v757 = vsel %vm729, %v752, %v756
    %v759 = vshrl.u32 %v697, 16
    %v761 = vrot.slane %v759, 4
    %v762 = vshll.u32 %v697, 16
    %v764 = vrot.slane %v762, 5
    %v765 = vor.u32 %v761, %v764
    %v766 = vrot.slane %v765, 4
    %v768 = vshll.u32 %v713, 16
    %v770 = vrot.slane %v768, 5
    %v771 = vsel %vm729, %v766, %v770
    %v773 = vshrl.u32 %v698, 16
    %v775 = vrot.slane %v773, 4
    %v776 = vshll.u32 %v698, 16
    %v778 = vrot.slane %v776, 5
    %v779 = vor.u32 %v775, %v778
    %v780 = vrot.slane %v779, 4
    %v782 = vshll.u32 %v714, 16
    %v784 = vrot.slane %v782, 5
    %v785 = vsel %vm729, %v780, %v784
    %v787 = vshrl.u32 %v699, 16
    %v789 = vrot.slane %v787, 4
    %v790 = vshll.u32 %v699, 16
    %v792 = vrot.slane %v790, 5
    %v793 = vor.u32 %v789, %v792
    %v794 = vrot.slane %v793, 4
    %v796 = vshll.u32 %v715, 16
    %v798 = vrot.slane %v796, 5
    %v799 = vsel %vm729, %v794, %v798
    %v801 = vshrl.u32 %v700, 16
    %v803 = vrot.slane %v801, 4
    %v804 = vshll.u32 %v700, 16
    %v806 = vrot.slane %v804, 5
    %v807 = vor.u32 %v803, %v806
    %v808 = vrot.slane %v807, 4
    %v810 = vshll.u32 %v716, 16
    %v812 = vrot.slane %v810, 5
    %v813 = vsel %vm729, %v808, %v812
    %v815 = vshrl.u32 %v701, 16
    %v817 = vrot.slane %v815, 4
    %v818 = vshll.u32 %v701, 16
    %v820 = vrot.slane %v818, 5
    %v821 = vor.u32 %v817, %v820
    %v822 = vrot.slane %v821, 4
    %v824 = vshll.u32 %v717, 16
    %v826 = vrot.slane %v824, 5
    %v827 = vsel %vm729, %v822, %v826
    %v829 = vshrl.u32 %v702, 16
    %v831 = vrot.slane %v829, 4
    %v832 = vshll.u32 %v702, 16
    %v834 = vrot.slane %v832, 5
    %v835 = vor.u32 %v831, %v834
    %v836 = vrot.slane %v835, 4
    %v838 = vshll.u32 %v718, 16
    %v840 = vrot.slane %v838, 5
    %v841 = vsel %vm729, %v836, %v840
    %v843 = vshrl.u32 %v703, 16
    %v845 = vrot.slane %v843, 4
    %v846 = vshll.u32 %v703, 16
    %v848 = vrot.slane %v846, 5
    %v849 = vor.u32 %v845, %v848
    %v850 = vrot.slane %v849, 4
    %v852 = vshll.u32 %v719, 16
    %v854 = vrot.slane %v852, 5
    %v855 = vsel %vm729, %v850, %v854
    %v857 = vshrl.u32 %v704, 16
    %v859 = vrot.slane %v857, 4
    %v860 = vshll.u32 %v704, 16
    %v862 = vrot.slane %v860, 5
    %v863 = vor.u32 %v859, %v862
    %v864 = vrot.slane %v863, 4
    %v866 = vshll.u32 %v720, 16
    %v868 = vrot.slane %v866, 5
    %v869 = vsel %vm729, %v864, %v868
    %v871 = vshrl.u32 %v705, 16
    %v873 = vrot.slane %v871, 4
    %v874 = vshll.u32 %v705, 16
    %v876 = vrot.slane %v874, 5
    %v877 = vor.u32 %v873, %v876
    %v878 = vrot.slane %v877, 4
    %v880 = vshll.u32 %v721, 16
    %v882 = vrot.slane %v880, 5
    %v883 = vsel %vm729, %v878, %v882
    %v885 = vshrl.u32 %v706, 16
    %v887 = vrot.slane %v885, 4
    %v888 = vshll.u32 %v706, 16
    %v890 = vrot.slane %v888, 5
    %v891 = vor.u32 %v887, %v890
    %v892 = vrot.slane %v891, 4
    %v894 = vshll.u32 %v722, 16
    %v896 = vrot.slane %v894, 5
    %v897 = vsel %vm729, %v892, %v896
    %v899 = vshrl.u32 %v707, 16
    %v901 = vrot.slane %v899, 4
    %v902 = vshll.u32 %v707, 16
    %v904 = vrot.slane %v902, 5
    %v905 = vor.u32 %v901, %v904
    %v906 = vrot.slane %v905, 4
    %v908 = vshll.u32 %v723, 16
    %v910 = vrot.slane %v908, 5
    %v911 = vsel %vm729, %v906, %v910
    %v913 = vshrl.u32 %v708, 16
    %v915 = vrot.slane %v913, 4
    %v916 = vshll.u32 %v708, 16
    %v918 = vrot.slane %v916, 5
    %v919 = vor.u32 %v915, %v918
    %v920 = vrot.slane %v919, 4
    %v922 = vshll.u32 %v724, 16
    %v924 = vrot.slane %v922, 5
    %v925 = vsel %vm729, %v920, %v924
    %v927 = vshrl.u32 %v709, 16
    %v929 = vrot.slane %v927, 4
    %v930 = vshll.u32 %v709, 16
    %v932 = vrot.slane %v930, 5
    %v933 = vor.u32 %v929, %v932
    %v934 = vrot.slane %v933, 4
    %v936 = vshll.u32 %v725, 16
    %v938 = vrot.slane %v936, 5
    %v939 = vsel %vm729, %v934, %v938
    %v941 = vshrl.u32 %v710, 16
    %v943 = vrot.slane %v941, 4
    %v944 = vshll.u32 %v710, 16
    %v946 = vrot.slane %v944, 5
    %v947 = vor.u32 %v943, %v946
    %v948 = vrot.slane %v947, 4
    %v950 = vshll.u32 %v726, 16
    %v952 = vrot.slane %v950, 5
    %v953 = vsel %vm729, %v948, %v952
    %v954 = vld [vmem:[#allocation2] sm:$0xe]
    %v955 = vld [vmem:[#allocation2 + $0x8] sm:$0xe]
    %v956 = vld [vmem:[#allocation2 + $0x10] sm:$0xe]
    %v957 = vld [vmem:[#allocation2 + $0x18] sm:$0xe]
    %v958 = vld [vmem:[#allocation2 + $0x20] sm:$0xe]
    %v959 = vld [vmem:[#allocation2 + $0x28] sm:$0xe]
    %v960 = vld [vmem:[#allocation2 + $0x30] sm:$0xe]
    %v961 = vld [vmem:[#allocation2 + $0x38] sm:$0xe]
    %v962 = vld [vmem:[#allocation2 + $0x50] sm:$0xe]
    %v963 = vld [vmem:[#allocation2 + $0x58] sm:$0xe]
    %v964 = vld [vmem:[#allocation2 + $0x60] sm:$0xe]
    %v965 = vld [vmem:[#allocation2 + $0x68] sm:$0xe]
    %v966 = vld [vmem:[#allocation2 + $0x70] sm:$0xe]
    %v967 = vld [vmem:[#allocation2 + $0x78] sm:$0xe]
    %v968 = vld [vmem:[#allocation2 + $0x80] sm:$0xe]
    %v969 = vld [vmem:[#allocation2 + $0x88] sm:$0xe]
    %vm1002 = vcmask 1042432
    %vm1003 = vcmask 1046532
    %vm1004 = vmor %vm1002, %vm1003
    %v1005 = vrot.slane %v954, 5
    %v1006 = vrot.slane %v1005, 4
    %v1007 = vrot.slane %v711, 5
    %v1008 = vsel %vm1004, %v1006, %v1007
    %v1009 = vrot.slane %v955, 5
    %v1010 = vrot.slane %v1009, 4
    %v1011 = vrot.slane %v712, 5
    %v1012 = vsel %vm1004, %v1010, %v1011
    %v1013 = vrot.slane %v956, 5
    %v1014 = vrot.slane %v1013, 4
    %v1015 = vrot.slane %v713, 5
    %v1016 = vsel %vm1004, %v1014, %v1015
    %v1017 = vrot.slane %v957, 5
    %v1018 = vrot.slane %v1017, 4
    %v1019 = vrot.slane %v714, 5
    %v1020 = vsel %vm1004, %v1018, %v1019
    %v1021 = vrot.slane %v958, 5
    %v1022 = vrot.slane %v1021, 4
    %v1023 = vrot.slane %v715, 5
    %v1024 = vsel %vm1004, %v1022, %v1023
    %v1025 = vrot.slane %v959, 5
    %v1026 = vrot.slane %v1025, 4
    %v1027 = vrot.slane %v716, 5
    %v1028 = vsel %vm1004, %v1026, %v1027
    %v1029 = vrot.slane %v960, 5
    %v1030 = vrot.slane %v1029, 4
    %v1031 = vrot.slane %v717, 5
    %v1032 = vsel %vm1004, %v1030, %v1031
    %v1033 = vrot.slane %v961, 5
    %v1034 = vrot.slane %v1033, 4
    %v1035 = vrot.slane %v718, 5
    %v1036 = vsel %vm1004, %v1034, %v1035
    %v1037 = vrot.slane %v962, 5
    %v1038 = vrot.slane %v1037, 4
    %v1039 = vrot.slane %v719, 5
    %v1040 = vsel %vm1004, %v1038, %v1039
    %v1041 = vrot.slane %v963, 5
    %v1042 = vrot.slane %v1041, 4
    %v1043 = vrot.slane %v720, 5
    %v1044 = vsel %vm1004, %v1042, %v1043
    %v1045 = vrot.slane %v964, 5
    %v1046 = vrot.slane %v1045, 4
    %v1047 = vrot.slane %v721, 5
    %v1048 = vsel %vm1004, %v1046, %v1047
    %v1049 = vrot.slane %v965, 5
    %v1050 = vrot.slane %v1049, 4
    %v1051 = vrot.slane %v722, 5
    %v1052 = vsel %vm1004, %v1050, %v1051
    %v1053 = vrot.slane %v966, 5
    %v1054 = vrot.slane %v1053, 4
    %v1055 = vrot.slane %v723, 5
    %v1056 = vsel %vm1004, %v1054, %v1055
    %v1057 = vrot.slane %v967, 5
    %v1058 = vrot.slane %v1057, 4
    %v1059 = vrot.slane %v724, 5
    %v1060 = vsel %vm1004, %v1058, %v1059
    %v1061 = vrot.slane %v968, 5
    %v1062 = vrot.slane %v1061, 4
    %v1063 = vrot.slane %v725, 5
    %v1064 = vsel %vm1004, %v1062, %v1063
    %v1065 = vrot.slane %v969, 5
    %v1066 = vrot.slane %v1065, 4
    %v1067 = vrot.slane %v726, 5
    %v1068 = vsel %vm1004, %v1066, %v1067
    %v1069 = vld [vmem:[%s596] sm:$0xf]
    %v1070 = vld [vmem:[%s596 + $0x8] sm:$0xf]
    %v1071 = vld [vmem:[%s596 + $0x10] sm:$0xf]
    %v1072 = vld [vmem:[%s596 + $0x18] sm:$0xf]
    %v1073 = vld [vmem:[%s596 + $0x20] sm:$0xf]
    %v1074 = vld [vmem:[%s596 + $0x28] sm:$0xf]
    %v1075 = vld [vmem:[%s596 + $0x30] sm:$0xf]
    %v1076 = vld [vmem:[%s596 + $0x38] sm:$0xf]
    %v1077 = vld [vmem:[%s596 + $0x50] sm:$0xf]
    %v1078 = vld [vmem:[%s596 + $0x58] sm:$0xf]
    %v1079 = vld [vmem:[%s596 + $0x60] sm:$0xf]
    %v1080 = vld [vmem:[%s596 + $0x68] sm:$0xf]
    %v1081 = vld [vmem:[%s596 + $0x70] sm:$0xf]
    %v1082 = vld [vmem:[%s596 + $0x78] sm:$0xf]
    %v1083 = vld [vmem:[%s596 + $0x80] sm:$0xf]
    %v1084 = vld [vmem:[%s596 + $0x88] sm:$0xf]
    %v1085 = vld [vmem:[%s596 + $0x4] sm:$0x1]
    %v1086 = vld [vmem:[%s596 + $0xc] sm:$0x1]
    %v1087 = vld [vmem:[%s596 + $0x14] sm:$0x1]
    %v1088 = vld [vmem:[%s596 + $0x1c] sm:$0x1]
    %v1089 = vld [vmem:[%s596 + $0x24] sm:$0x1]
    %v1090 = vld [vmem:[%s596 + $0x2c] sm:$0x1]
    %v1091 = vld [vmem:[%s596 + $0x34] sm:$0x1]
    %v1092 = vld [vmem:[%s596 + $0x3c] sm:$0x1]
    %v1093 = vld [vmem:[%s596 + $0x54] sm:$0x1]
    %v1094 = vld [vmem:[%s596 + $0x5c] sm:$0x1]
    %v1095 = vld [vmem:[%s596 + $0x64] sm:$0x1]
    %v1096 = vld [vmem:[%s596 + $0x6c] sm:$0x1]
    %v1097 = vld [vmem:[%s596 + $0x74] sm:$0x1]
    %v1098 = vld [vmem:[%s596 + $0x7c] sm:$0x1]
    %v1099 = vld [vmem:[%s596 + $0x84] sm:$0x1]
    %v1100 = vld [vmem:[%s596 + $0x8c] sm:$0x1]
    %v1102 = vshrl.u32 %v1069, 16
    %v1104 = vrot.slane %v1102, 4
    %v1105 = vshll.u32 %v1069, 16
    %v1107 = vrot.slane %v1105, 5
    %v1108 = vor.u32 %v1104, %v1107
    %v1109 = vrot.slane %v1108, 4
    %v1111 = vshll.u32 %v1085, 16
    %v1113 = vrot.slane %v1111, 5
    %v1114 = vsel %vm729, %v1109, %v1113
    %v1116 = vshrl.u32 %v1070, 16
    %v1118 = vrot.slane %v1116, 4
    %v1119 = vshll.u32 %v1070, 16
    %v1121 = vrot.slane %v1119, 5
    %v1122 = vor.u32 %v1118, %v1121
    %v1123 = vrot.slane %v1122, 4
    %v1125 = vshll.u32 %v1086, 16
    %v1127 = vrot.slane %v1125, 5
    %v1128 = vsel %vm729, %v1123, %v1127
    %v1130 = vshrl.u32 %v1071, 16
    %v1132 = vrot.slane %v1130, 4
    %v1133 = vshll.u32 %v1071, 16
    %v1135 = vrot.slane %v1133, 5
    %v1136 = vor.u32 %v1132, %v1135
    %v1137 = vrot.slane %v1136, 4
    %v1139 = vshll.u32 %v1087, 16
    %v1141 = vrot.slane %v1139, 5
    %v1142 = vsel %vm729, %v1137, %v1141
    %v1144 = vshrl.u32 %v1072, 16
    %v1146 = vrot.slane %v1144, 4
    %v1147 = vshll.u32 %v1072, 16
    %v1149 = vrot.slane %v1147, 5
    %v1150 = vor.u32 %v1146, %v1149
    %v1151 = vrot.slane %v1150, 4
    %v1153 = vshll.u32 %v1088, 16
    %v1155 = vrot.slane %v1153, 5
    %v1156 = vsel %vm729, %v1151, %v1155
    %v1158 = vshrl.u32 %v1073, 16
    %v1160 = vrot.slane %v1158, 4
    %v1161 = vshll.u32 %v1073, 16
    %v1163 = vrot.slane %v1161, 5
    %v1164 = vor.u32 %v1160, %v1163
    %v1165 = vrot.slane %v1164, 4
    %v1167 = vshll.u32 %v1089, 16
    %v1169 = vrot.slane %v1167, 5
    %v1170 = vsel %vm729, %v1165, %v1169
    %v1172 = vshrl.u32 %v1074, 16
    %v1174 = vrot.slane %v1172, 4
    %v1175 = vshll.u32 %v1074, 16
    %v1177 = vrot.slane %v1175, 5
    %v1178 = vor.u32 %v1174, %v1177
    %v1179 = vrot.slane %v1178, 4
    %v1181 = vshll.u32 %v1090, 16
    %v1183 = vrot.slane %v1181, 5
    %v1184 = vsel %vm729, %v1179, %v1183
    %v1186 = vshrl.u32 %v1075, 16
    %v1188 = vrot.slane %v1186, 4
    %v1189 = vshll.u32 %v1075, 16
    %v1191 = vrot.slane %v1189, 5
    %v1192 = vor.u32 %v1188, %v1191
    %v1193 = vrot.slane %v1192, 4
    %v1195 = vshll.u32 %v1091, 16
    %v1197 = vrot.slane %v1195, 5
    %v1198 = vsel %vm729, %v1193, %v1197
    %v1200 = vshrl.u32 %v1076, 16
    %v1202 = vrot.slane %v1200, 4
    %v1203 = vshll.u32 %v1076, 16
    %v1205 = vrot.slane %v1203, 5
    %v1206 = vor.u32 %v1202, %v1205
    %v1207 = vrot.slane %v1206, 4
    %v1209 = vshll.u32 %v1092, 16
    %v1211 = vrot.slane %v1209, 5
    %v1212 = vsel %vm729, %v1207, %v1211
    %v1214 = vshrl.u32 %v1077, 16
    %v1216 = vrot.slane %v1214, 4
    %v1217 = vshll.u32 %v1077, 16
    %v1219 = vrot.slane %v1217, 5
    %v1220 = vor.u32 %v1216, %v1219
    %v1221 = vrot.slane %v1220, 4
    %v1223 = vshll.u32 %v1093, 16
    %v1225 = vrot.slane %v1223, 5
    %v1226 = vsel %vm729, %v1221, %v1225
    %v1228 = vshrl.u32 %v1078, 16
    %v1230 = vrot.slane %v1228, 4
    %v1231 = vshll.u32 %v1078, 16
    %v1233 = vrot.slane %v1231, 5
    %v1234 = vor.u32 %v1230, %v1233
    %v1235 = vrot.slane %v1234, 4
    %v1237 = vshll.u32 %v1094, 16
    %v1239 = vrot.slane %v1237, 5
    %v1240 = vsel %vm729, %v1235, %v1239
    %v1242 = vshrl.u32 %v1079, 16
    %v1244 = vrot.slane %v1242, 4
    %v1245 = vshll.u32 %v1079, 16
    %v1247 = vrot.slane %v1245, 5
    %v1248 = vor.u32 %v1244, %v1247
    %v1249 = vrot.slane %v1248, 4
    %v1251 = vshll.u32 %v1095, 16
    %v1253 = vrot.slane %v1251, 5
    %v1254 = vsel %vm729, %v1249, %v1253
    %v1256 = vshrl.u32 %v1080, 16
    %v1258 = vrot.slane %v1256, 4
    %v1259 = vshll.u32 %v1080, 16
    %v1261 = vrot.slane %v1259, 5
    %v1262 = vor.u32 %v1258, %v1261
    %v1263 = vrot.slane %v1262, 4
    %v1265 = vshll.u32 %v1096, 16
    %v1267 = vrot.slane %v1265, 5
    %v1268 = vsel %vm729, %v1263, %v1267
    %v1270 = vshrl.u32 %v1081, 16
    %v1272 = vrot.slane %v1270, 4
    %v1273 = vshll.u32 %v1081, 16
    %v1275 = vrot.slane %v1273, 5
    %v1276 = vor.u32 %v1272, %v1275
    %v1277 = vrot.slane %v1276, 4
    %v1279 = vshll.u32 %v1097, 16
    %v1281 = vrot.slane %v1279, 5
    %v1282 = vsel %vm729, %v1277, %v1281
    %v1284 = vshrl.u32 %v1082, 16
    %v1286 = vrot.slane %v1284, 4
    %v1287 = vshll.u32 %v1082, 16
    %v1289 = vrot.slane %v1287, 5
    %v1290 = vor.u32 %v1286, %v1289
    %v1291 = vrot.slane %v1290, 4
    %v1293 = vshll.u32 %v1098, 16
    %v1295 = vrot.slane %v1293, 5
    %v1296 = vsel %vm729, %v1291, %v1295
    %v1298 = vshrl.u32 %v1083, 16
    %v1300 = vrot.slane %v1298, 4
    %v1301 = vshll.u32 %v1083, 16
    %v1303 = vrot.slane %v1301, 5
    %v1304 = vor.u32 %v1300, %v1303
    %v1305 = vrot.slane %v1304, 4
    %v1307 = vshll.u32 %v1099, 16
    %v1309 = vrot.slane %v1307, 5
    %v1310 = vsel %vm729, %v1305, %v1309
    %v1312 = vshrl.u32 %v1084, 16
    %v1314 = vrot.slane %v1312, 4
    %v1315 = vshll.u32 %v1084, 16
    %v1317 = vrot.slane %v1315, 5
    %v1318 = vor.u32 %v1314, %v1317
    %v1319 = vrot.slane %v1318, 4
    %v1321 = vshll.u32 %v1100, 16
    %v1323 = vrot.slane %v1321, 5
    %v1324 = vsel %vm729, %v1319, %v1323
    %v1325 = vld [vmem:[%s596] sm:$0xe]
    %v1326 = vld [vmem:[%s596 + $0x8] sm:$0xe]
    %v1327 = vld [vmem:[%s596 + $0x10] sm:$0xe]
    %v1328 = vld [vmem:[%s596 + $0x18] sm:$0xe]
    %v1329 = vld [vmem:[%s596 + $0x20] sm:$0xe]
    %v1330 = vld [vmem:[%s596 + $0x28] sm:$0xe]
    %v1331 = vld [vmem:[%s596 + $0x30] sm:$0xe]
    %v1332 = vld [vmem:[%s596 + $0x38] sm:$0xe]
    %v1333 = vld [vmem:[%s596 + $0x50] sm:$0xe]
    %v1334 = vld [vmem:[%s596 + $0x58] sm:$0xe]
    %v1335 = vld [vmem:[%s596 + $0x60] sm:$0xe]
    %v1336 = vld [vmem:[%s596 + $0x68] sm:$0xe]
    %v1337 = vld [vmem:[%s596 + $0x70] sm:$0xe]
    %v1338 = vld [vmem:[%s596 + $0x78] sm:$0xe]
    %v1339 = vld [vmem:[%s596 + $0x80] sm:$0xe]
    %v1340 = vld [vmem:[%s596 + $0x88] sm:$0xe]
    %v1373 = vrot.slane %v1325, 5
    %v1374 = vrot.slane %v1373, 4
    %v1375 = vrot.slane %v1085, 5
    %v1376 = vsel %vm1004, %v1374, %v1375
    %v1377 = vrot.slane %v1326, 5
    %v1378 = vrot.slane %v1377, 4
    %v1379 = vrot.slane %v1086, 5
    %v1380 = vsel %vm1004, %v1378, %v1379
    %v1381 = vrot.slane %v1327, 5
    %v1382 = vrot.slane %v1381, 4
    %v1383 = vrot.slane %v1087, 5
    %v1384 = vsel %vm1004, %v1382, %v1383
    %v1385 = vrot.slane %v1328, 5
    %v1386 = vrot.slane %v1385, 4
    %v1387 = vrot.slane %v1088, 5
    %v1388 = vsel %vm1004, %v1386, %v1387
    %v1389 = vrot.slane %v1329, 5
    %v1390 = vrot.slane %v1389, 4
    %v1391 = vrot.slane %v1089, 5
    %v1392 = vsel %vm1004, %v1390, %v1391
    %v1393 = vrot.slane %v1330, 5
    %v1394 = vrot.slane %v1393, 4
    %v1395 = vrot.slane %v1090, 5
    %v1396 = vsel %vm1004, %v1394, %v1395
    %v1397 = vrot.slane %v1331, 5
    %v1398 = vrot.slane %v1397, 4
    %v1399 = vrot.slane %v1091, 5
    %v1400 = vsel %vm1004, %v1398, %v1399
    %v1401 = vrot.slane %v1332, 5
    %v1402 = vrot.slane %v1401, 4
    %v1403 = vrot.slane %v1092, 5
    %v1404 = vsel %vm1004, %v1402, %v1403
    %v1405 = vrot.slane %v1333, 5
    %v1406 = vrot.slane %v1405, 4
    %v1407 = vrot.slane %v1093, 5
    %v1408 = vsel %vm1004, %v1406, %v1407
    %v1409 = vrot.slane %v1334, 5
    %v1410 = vrot.slane %v1409, 4
    %v1411 = vrot.slane %v1094, 5
    %v1412 = vsel %vm1004, %v1410, %v1411
    %v1413 = vrot.slane %v1335, 5
    %v1414 = vrot.slane %v1413, 4
    %v1415 = vrot.slane %v1095, 5
    %v1416 = vsel %vm1004, %v1414, %v1415
    %v1417 = vrot.slane %v1336, 5
    %v1418 = vrot.slane %v1417, 4
    %v1419 = vrot.slane %v1096, 5
    %v1420 = vsel %vm1004, %v1418, %v1419
    %v1421 = vrot.slane %v1337, 5
    %v1422 = vrot.slane %v1421, 4
    %v1423 = vrot.slane %v1097, 5
    %v1424 = vsel %vm1004, %v1422, %v1423
    %v1425 = vrot.slane %v1338, 5
    %v1426 = vrot.slane %v1425, 4
    %v1427 = vrot.slane %v1098, 5
    %v1428 = vsel %vm1004, %v1426, %v1427
    %v1429 = vrot.slane %v1339, 5
    %v1430 = vrot.slane %v1429, 4
    %v1431 = vrot.slane %v1099, 5
    %v1432 = vsel %vm1004, %v1430, %v1431
    %v1433 = vrot.slane %v1340, 5
    %v1434 = vrot.slane %v1433, 4
    %v1435 = vrot.slane %v1100, 5
    %v1436 = vsel %vm1004, %v1434, %v1435
    %s1437 = scalar_lea.vmem [#allocation2], 16
    %v1438 = vld [vmem:[%s1437] sm:$0xf]
    %v1439 = vld [vmem:[%s1437 + $0x8] sm:$0xf]
    %v1440 = vld [vmem:[%s1437 + $0x10] sm:$0xf]
    %v1441 = vld [vmem:[%s1437 + $0x18] sm:$0xf]
    %v1442 = vld [vmem:[%s1437 + $0x20] sm:$0xf]
    %v1443 = vld [vmem:[%s1437 + $0x28] sm:$0xf]
    %v1444 = vld [vmem:[%s1437 + $0x30] sm:$0xf]
    %v1445 = vld [vmem:[%s1437 + $0x38] sm:$0xf]
    %v1446 = vld [vmem:[%s1437 + $0x50] sm:$0xf]
    %v1447 = vld [vmem:[%s1437 + $0x58] sm:$0xf]
    %v1448 = vld [vmem:[%s1437 + $0x60] sm:$0xf]
    %v1449 = vld [vmem:[%s1437 + $0x68] sm:$0xf]
    %v1450 = vld [vmem:[%s1437 + $0x70] sm:$0xf]
    %v1451 = vld [vmem:[%s1437 + $0x78] sm:$0xf]
    %v1452 = vld [vmem:[%s1437 + $0x80] sm:$0xf]
    %v1453 = vld [vmem:[%s1437 + $0x88] sm:$0xf]
    %v1454 = vld [vmem:[%s1437 + $0x4] sm:$0x1]
    %v1455 = vld [vmem:[%s1437 + $0xc] sm:$0x1]
    %v1456 = vld [vmem:[%s1437 + $0x14] sm:$0x1]
    %v1457 = vld [vmem:[%s1437 + $0x1c] sm:$0x1]
    %v1458 = vld [vmem:[%s1437 + $0x24] sm:$0x1]
    %v1459 = vld [vmem:[%s1437 + $0x2c] sm:$0x1]
    %v1460 = vld [vmem:[%s1437 + $0x34] sm:$0x1]
    %v1461 = vld [vmem:[%s1437 + $0x3c] sm:$0x1]
    %v1462 = vld [vmem:[%s1437 + $0x54] sm:$0x1]
    %v1463 = vld [vmem:[%s1437 + $0x5c] sm:$0x1]
    %v1464 = vld [vmem:[%s1437 + $0x64] sm:$0x1]
    %v1465 = vld [vmem:[%s1437 + $0x6c] sm:$0x1]
    %v1466 = vld [vmem:[%s1437 + $0x74] sm:$0x1]
    %v1467 = vld [vmem:[%s1437 + $0x7c] sm:$0x1]
    %v1468 = vld [vmem:[%s1437 + $0x84] sm:$0x1]
    %v1469 = vld [vmem:[%s1437 + $0x8c] sm:$0x1]
    %v1471 = vshrl.u32 %v1438, 16
    %v1473 = vrot.slane %v1471, 4
    %v1474 = vshll.u32 %v1438, 16
    %v1476 = vrot.slane %v1474, 5
    %v1477 = vor.u32 %v1473, %v1476
    %v1478 = vrot.slane %v1477, 4
    %v1480 = vshll.u32 %v1454, 16
    %v1482 = vrot.slane %v1480, 5
    %v1483 = vsel %vm729, %v1478, %v1482
    %v1485 = vshrl.u32 %v1439, 16
    %v1487 = vrot.slane %v1485, 4
    %v1488 = vshll.u32 %v1439, 16
    %v1490 = vrot.slane %v1488, 5
    %v1491 = vor.u32 %v1487, %v1490
    %v1492 = vrot.slane %v1491, 4
    %v1494 = vshll.u32 %v1455, 16
    %v1496 = vrot.slane %v1494, 5
    %v1497 = vsel %vm729, %v1492, %v1496
    %v1499 = vshrl.u32 %v1440, 16
    %v1501 = vrot.slane %v1499, 4
    %v1502 = vshll.u32 %v1440, 16
    %v1504 = vrot.slane %v1502, 5
    %v1505 = vor.u32 %v1501, %v1504
    %v1506 = vrot.slane %v1505, 4
    %v1508 = vshll.u32 %v1456, 16
    %v1510 = vrot.slane %v1508, 5
    %v1511 = vsel %vm729, %v1506, %v1510
    %v1513 = vshrl.u32 %v1441, 16
    %v1515 = vrot.slane %v1513, 4
    %v1516 = vshll.u32 %v1441, 16
    %v1518 = vrot.slane %v1516, 5
    %v1519 = vor.u32 %v1515, %v1518
    %v1520 = vrot.slane %v1519, 4
    %v1522 = vshll.u32 %v1457, 16
    %v1524 = vrot.slane %v1522, 5
    %v1525 = vsel %vm729, %v1520, %v1524
    %v1527 = vshrl.u32 %v1442, 16
    %v1529 = vrot.slane %v1527, 4
    %v1530 = vshll.u32 %v1442, 16
    %v1532 = vrot.slane %v1530, 5
    %v1533 = vor.u32 %v1529, %v1532
    %v1534 = vrot.slane %v1533, 4
    %v1536 = vshll.u32 %v1458, 16
    %v1538 = vrot.slane %v1536, 5
    %v1539 = vsel %vm729, %v1534, %v1538
    %v1541 = vshrl.u32 %v1443, 16
    %v1543 = vrot.slane %v1541, 4
    %v1544 = vshll.u32 %v1443, 16
    %v1546 = vrot.slane %v1544, 5
    %v1547 = vor.u32 %v1543, %v1546
    %v1548 = vrot.slane %v1547, 4
    %v1550 = vshll.u32 %v1459, 16
    %v1552 = vrot.slane %v1550, 5
    %v1553 = vsel %vm729, %v1548, %v1552
    %v1555 = vshrl.u32 %v1444, 16
    %v1557 = vrot.slane %v1555, 4
    %v1558 = vshll.u32 %v1444, 16
    %v1560 = vrot.slane %v1558, 5
    %v1561 = vor.u32 %v1557, %v1560
    %v1562 = vrot.slane %v1561, 4
    %v1564 = vshll.u32 %v1460, 16
    %v1566 = vrot.slane %v1564, 5
    %v1567 = vsel %vm729, %v1562, %v1566
    %v1569 = vshrl.u32 %v1445, 16
    %v1571 = vrot.slane %v1569, 4
    %v1572 = vshll.u32 %v1445, 16
    %v1574 = vrot.slane %v1572, 5
    %v1575 = vor.u32 %v1571, %v1574
    %v1576 = vrot.slane %v1575, 4
    %v1578 = vshll.u32 %v1461, 16
    %v1580 = vrot.slane %v1578, 5
    %v1581 = vsel %vm729, %v1576, %v1580
    %v1583 = vshrl.u32 %v1446, 16
    %v1585 = vrot.slane %v1583, 4
    %v1586 = vshll.u32 %v1446, 16
    %v1588 = vrot.slane %v1586, 5
    %v1589 = vor.u32 %v1585, %v1588
    %v1590 = vrot.slane %v1589, 4
    %v1592 = vshll.u32 %v1462, 16
    %v1594 = vrot.slane %v1592, 5
    %v1595 = vsel %vm729, %v1590, %v1594
    %v1597 = vshrl.u32 %v1447, 16
    %v1599 = vrot.slane %v1597, 4
    %v1600 = vshll.u32 %v1447, 16
    %v1602 = vrot.slane %v1600, 5
    %v1603 = vor.u32 %v1599, %v1602
    %v1604 = vrot.slane %v1603, 4
    %v1606 = vshll.u32 %v1463, 16
    %v1608 = vrot.slane %v1606, 5
    %v1609 = vsel %vm729, %v1604, %v1608
    %v1611 = vshrl.u32 %v1448, 16
    %v1613 = vrot.slane %v1611, 4
    %v1614 = vshll.u32 %v1448, 16
    %v1616 = vrot.slane %v1614, 5
    %v1617 = vor.u32 %v1613, %v1616
    %v1618 = vrot.slane %v1617, 4
    %v1620 = vshll.u32 %v1464, 16
    %v1622 = vrot.slane %v1620, 5
    %v1623 = vsel %vm729, %v1618, %v1622
    %v1625 = vshrl.u32 %v1449, 16
    %v1627 = vrot.slane %v1625, 4
    %v1628 = vshll.u32 %v1449, 16
    %v1630 = vrot.slane %v1628, 5
    %v1631 = vor.u32 %v1627, %v1630
    %v1632 = vrot.slane %v1631, 4
    %v1634 = vshll.u32 %v1465, 16
    %v1636 = vrot.slane %v1634, 5
    %v1637 = vsel %vm729, %v1632, %v1636
    %v1639 = vshrl.u32 %v1450, 16
    %v1641 = vrot.slane %v1639, 4
    %v1642 = vshll.u32 %v1450, 16
    %v1644 = vrot.slane %v1642, 5
    %v1645 = vor.u32 %v1641, %v1644
    %v1646 = vrot.slane %v1645, 4
    %v1648 = vshll.u32 %v1466, 16
    %v1650 = vrot.slane %v1648, 5
    %v1651 = vsel %vm729, %v1646, %v1650
    %v1653 = vshrl.u32 %v1451, 16
    %v1655 = vrot.slane %v1653, 4
    %v1656 = vshll.u32 %v1451, 16
    %v1658 = vrot.slane %v1656, 5
    %v1659 = vor.u32 %v1655, %v1658
    %v1660 = vrot.slane %v1659, 4
    %v1662 = vshll.u32 %v1467, 16
    %v1664 = vrot.slane %v1662, 5
    %v1665 = vsel %vm729, %v1660, %v1664
    %v1667 = vshrl.u32 %v1452, 16
    %v1669 = vrot.slane %v1667, 4
    %v1670 = vshll.u32 %v1452, 16
    %v1672 = vrot.slane %v1670, 5
    %v1673 = vor.u32 %v1669, %v1672
    %v1674 = vrot.slane %v1673, 4
    %v1676 = vshll.u32 %v1468, 16
    %v1678 = vrot.slane %v1676, 5
    %v1679 = vsel %vm729, %v1674, %v1678
    %v1681 = vshrl.u32 %v1453, 16
    %v1683 = vrot.slane %v1681, 4
    %v1684 = vshll.u32 %v1453, 16
    %v1686 = vrot.slane %v1684, 5
    %v1687 = vor.u32 %v1683, %v1686
    %v1688 = vrot.slane %v1687, 4
    %v1690 = vshll.u32 %v1469, 16
    %v1692 = vrot.slane %v1690, 5
    %v1693 = vsel %vm729, %v1688, %v1692
    %v1694 = vld [vmem:[%s1437] sm:$0xe]
    %v1695 = vld [vmem:[%s1437 + $0x8] sm:$0xe]
    %v1696 = vld [vmem:[%s1437 + $0x10] sm:$0xe]
    %v1697 = vld [vmem:[%s1437 + $0x18] sm:$0xe]
    %v1698 = vld [vmem:[%s1437 + $0x20] sm:$0xe]
    %v1699 = vld [vmem:[%s1437 + $0x28] sm:$0xe]
    %v1700 = vld [vmem:[%s1437 + $0x30] sm:$0xe]
    %v1701 = vld [vmem:[%s1437 + $0x38] sm:$0xe]
    %v1702 = vld [vmem:[%s1437 + $0x50] sm:$0xe]
    %v1703 = vld [vmem:[%s1437 + $0x58] sm:$0xe]
    %v1704 = vld [vmem:[%s1437 + $0x60] sm:$0xe]
    %v1705 = vld [vmem:[%s1437 + $0x68] sm:$0xe]
    %v1706 = vld [vmem:[%s1437 + $0x70] sm:$0xe]
    %v1707 = vld [vmem:[%s1437 + $0x78] sm:$0xe]
    %v1708 = vld [vmem:[%s1437 + $0x80] sm:$0xe]
    %v1709 = vld [vmem:[%s1437 + $0x88] sm:$0xe]
    %v1742 = vrot.slane %v1694, 5
    %v1743 = vrot.slane %v1742, 4
    %v1744 = vrot.slane %v1454, 5
    %v1745 = vsel %vm1004, %v1743, %v1744
    %v1746 = vrot.slane %v1695, 5
    %v1747 = vrot.slane %v1746, 4
    %v1748 = vrot.slane %v1455, 5
    %v1749 = vsel %vm1004, %v1747, %v1748
    %v1750 = vrot.slane %v1696, 5
    %v1751 = vrot.slane %v1750, 4
    %v1752 = vrot.slane %v1456, 5
    %v1753 = vsel %vm1004, %v1751, %v1752
    %v1754 = vrot.slane %v1697, 5
    %v1755 = vrot.slane %v1754, 4
    %v1756 = vrot.slane %v1457, 5
    %v1757 = vsel %vm1004, %v1755, %v1756
    %v1758 = vrot.slane %v1698, 5
    %v1759 = vrot.slane %v1758, 4
    %v1760 = vrot.slane %v1458, 5
    %v1761 = vsel %vm1004, %v1759, %v1760
    %v1762 = vrot.slane %v1699, 5
    %v1763 = vrot.slane %v1762, 4
    %v1764 = vrot.slane %v1459, 5
    %v1765 = vsel %vm1004, %v1763, %v1764
    %v1766 = vrot.slane %v1700, 5
    %v1767 = vrot.slane %v1766, 4
    %v1768 = vrot.slane %v1460, 5
    %v1769 = vsel %vm1004, %v1767, %v1768
    %v1770 = vrot.slane %v1701, 5
    %v1771 = vrot.slane %v1770, 4
    %v1772 = vrot.slane %v1461, 5
    %v1773 = vsel %vm1004, %v1771, %v1772
    %v1774 = vrot.slane %v1702, 5
    %v1775 = vrot.slane %v1774, 4
    %v1776 = vrot.slane %v1462, 5
    %v1777 = vsel %vm1004, %v1775, %v1776
    %v1778 = vrot.slane %v1703, 5
    %v1779 = vrot.slane %v1778, 4
    %v1780 = vrot.slane %v1463, 5
    %v1781 = vsel %vm1004, %v1779, %v1780
    %v1782 = vrot.slane %v1704, 5
    %v1783 = vrot.slane %v1782, 4
    %v1784 = vrot.slane %v1464, 5
    %v1785 = vsel %vm1004, %v1783, %v1784
    %v1786 = vrot.slane %v1705, 5
    %v1787 = vrot.slane %v1786, 4
    %v1788 = vrot.slane %v1465, 5
    %v1789 = vsel %vm1004, %v1787, %v1788
    %v1790 = vrot.slane %v1706, 5
    %v1791 = vrot.slane %v1790, 4
    %v1792 = vrot.slane %v1466, 5
    %v1793 = vsel %vm1004, %v1791, %v1792
    %v1794 = vrot.slane %v1707, 5
    %v1795 = vrot.slane %v1794, 4
    %v1796 = vrot.slane %v1467, 5
    %v1797 = vsel %vm1004, %v1795, %v1796
    %v1798 = vrot.slane %v1708, 5
    %v1799 = vrot.slane %v1798, 4
    %v1800 = vrot.slane %v1468, 5
    %v1801 = vsel %vm1004, %v1799, %v1800
    %v1802 = vrot.slane %v1709, 5
    %v1803 = vrot.slane %v1802, 4
    %v1804 = vrot.slane %v1469, 5
    %v1805 = vsel %vm1004, %v1803, %v1804
    %v1822 = vunpack.c.l.b16 %v695
    %v1823 = vunpack.c.l.b16 %v696
    %v1824 = vunpack.c.l.b16 %v697
    %v1825 = vunpack.c.l.b16 %v698
    %v1826 = vunpack.c.l.b16 %v699
    %v1827 = vunpack.c.l.b16 %v700
    %v1828 = vunpack.c.l.b16 %v701
    %v1829 = vunpack.c.l.b16 %v702
    %v1830 = vunpack.c.l.b16 %v703
    %v1831 = vunpack.c.l.b16 %v704
    %v1832 = vunpack.c.l.b16 %v705
    %v1833 = vunpack.c.l.b16 %v706
    %v1834 = vunpack.c.l.b16 %v707
    %v1835 = vunpack.c.l.b16 %v708
    %v1836 = vunpack.c.l.b16 %v709
    %v1837 = vunpack.c.l.b16 %v710
    %v1838 = vpack.c.b16 %v1823, %v1822
    %v1839 = vpack.c.b16 %v1825, %v1824
    %v1840 = vpack.c.b16 %v1827, %v1826
    %v1841 = vpack.c.b16 %v1829, %v1828
    %v1842 = vpack.c.b16 %v1831, %v1830
    %v1843 = vpack.c.b16 %v1833, %v1832
    %v1844 = vpack.c.b16 %v1835, %v1834
    %v1845 = vpack.c.b16 %v1837, %v1836
    %v1846 = vunpack.c.l.b16 %v743
    %v1847 = vunpack.c.l.b16 %v757
    %v1848 = vunpack.c.l.b16 %v771
    %v1849 = vunpack.c.l.b16 %v785
    %v1850 = vunpack.c.l.b16 %v799
    %v1851 = vunpack.c.l.b16 %v813
    %v1852 = vunpack.c.l.b16 %v827
    %v1853 = vunpack.c.l.b16 %v841
    %v1854 = vunpack.c.l.b16 %v855
    %v1855 = vunpack.c.l.b16 %v869
    %v1856 = vunpack.c.l.b16 %v883
    %v1857 = vunpack.c.l.b16 %v897
    %v1858 = vunpack.c.l.b16 %v911
    %v1859 = vunpack.c.l.b16 %v925
    %v1860 = vunpack.c.l.b16 %v939
    %v1861 = vunpack.c.l.b16 %v953
    %v1862 = vpack.c.b16 %v1847, %v1846
    %v1863 = vpack.c.b16 %v1849, %v1848
    %v1864 = vpack.c.b16 %v1851, %v1850
    %v1865 = vpack.c.b16 %v1853, %v1852
    %v1866 = vpack.c.b16 %v1855, %v1854
    %v1867 = vpack.c.b16 %v1857, %v1856
    %v1868 = vpack.c.b16 %v1859, %v1858
    %v1869 = vpack.c.b16 %v1861, %v1860
    %1870 = vrot.lane.b32.xlu0 %v1862, 4
    %v1871 = vpop.permute.xlu0 %1870
    %1872 = vrot.lane.b32.xlu0 %v1863, 4
    %v1873 = vpop.permute.xlu0 %1872
    %1874 = vrot.lane.b32.xlu0 %v1864, 4
    %v1875 = vpop.permute.xlu0 %1874
    %1876 = vrot.lane.b32.xlu0 %v1865, 4
    %v1877 = vpop.permute.xlu0 %1876
    %1878 = vrot.lane.b32.xlu0 %v1866, 4
    %v1879 = vpop.permute.xlu0 %1878
    %1880 = vrot.lane.b32.xlu0 %v1867, 4
    %v1881 = vpop.permute.xlu0 %1880
    %1882 = vrot.lane.b32.xlu0 %v1868, 4
    %v1883 = vpop.permute.xlu0 %1882
    %1884 = vrot.lane.b32.xlu0 %v1869, 4
    %v1885 = vpop.permute.xlu0 %1884
    %v1886 = vunpack.c.l.b16 %v1008
    %v1887 = vunpack.c.l.b16 %v1012
    %v1888 = vunpack.c.l.b16 %v1016
    %v1889 = vunpack.c.l.b16 %v1020
    %v1890 = vunpack.c.l.b16 %v1024
    %v1891 = vunpack.c.l.b16 %v1028
    %v1892 = vunpack.c.l.b16 %v1032
    %v1893 = vunpack.c.l.b16 %v1036
    %v1894 = vunpack.c.l.b16 %v1040
    %v1895 = vunpack.c.l.b16 %v1044
    %v1896 = vunpack.c.l.b16 %v1048
    %v1897 = vunpack.c.l.b16 %v1052
    %v1898 = vunpack.c.l.b16 %v1056
    %v1899 = vunpack.c.l.b16 %v1060
    %v1900 = vunpack.c.l.b16 %v1064
    %v1901 = vunpack.c.l.b16 %v1068
    %v1902 = vpack.c.b16 %v1887, %v1886
    %v1903 = vpack.c.b16 %v1889, %v1888
    %v1904 = vpack.c.b16 %v1891, %v1890
    %v1905 = vpack.c.b16 %v1893, %v1892
    %v1906 = vpack.c.b16 %v1895, %v1894
    %v1907 = vpack.c.b16 %v1897, %v1896
    %v1908 = vpack.c.b16 %v1899, %v1898
    %v1909 = vpack.c.b16 %v1901, %v1900
    %1910 = vrot.lane.b32.xlu0 %v1902, 8
    %v1911 = vpop.permute.xlu0 %1910
    %1912 = vrot.lane.b32.xlu0 %v1903, 8
    %v1913 = vpop.permute.xlu0 %1912
    %1914 = vrot.lane.b32.xlu0 %v1904, 8
    %v1915 = vpop.permute.xlu0 %1914
    %1916 = vrot.lane.b32.xlu0 %v1905, 8
    %v1917 = vpop.permute.xlu0 %1916
    %1918 = vrot.lane.b32.xlu0 %v1906, 8
    %v1919 = vpop.permute.xlu0 %1918
    %1920 = vrot.lane.b32.xlu0 %v1907, 8
    %v1921 = vpop.permute.xlu0 %1920
    %1922 = vrot.lane.b32.xlu0 %v1908, 8
    %v1923 = vpop.permute.xlu0 %1922
    %1924 = vrot.lane.b32.xlu0 %v1909, 8
    %v1925 = vpop.permute.xlu0 %1924
    %v1942 = vunpack.c.l.b16 %v1069
    %v1943 = vunpack.c.l.b16 %v1070
    %v1944 = vunpack.c.l.b16 %v1071
    %v1945 = vunpack.c.l.b16 %v1072
    %v1946 = vunpack.c.l.b16 %v1073
    %v1947 = vunpack.c.l.b16 %v1074
    %v1948 = vunpack.c.l.b16 %v1075
    %v1949 = vunpack.c.l.b16 %v1076
    %v1950 = vunpack.c.l.b16 %v1077
    %v1951 = vunpack.c.l.b16 %v1078
    %v1952 = vunpack.c.l.b16 %v1079
    %v1953 = vunpack.c.l.b16 %v1080
    %v1954 = vunpack.c.l.b16 %v1081
    %v1955 = vunpack.c.l.b16 %v1082
    %v1956 = vunpack.c.l.b16 %v1083
    %v1957 = vunpack.c.l.b16 %v1084
    %v1958 = vpack.c.b16 %v1943, %v1942
    %v1959 = vpack.c.b16 %v1945, %v1944
    %v1960 = vpack.c.b16 %v1947, %v1946
    %v1961 = vpack.c.b16 %v1949, %v1948
    %v1962 = vpack.c.b16 %v1951, %v1950
    %v1963 = vpack.c.b16 %v1953, %v1952
    %v1964 = vpack.c.b16 %v1955, %v1954
    %v1965 = vpack.c.b16 %v1957, %v1956
    %1966 = vrot.lane.b32.xlu0 %v1958, 12
    %v1967 = vpop.permute.xlu0 %1966
    %1968 = vrot.lane.b32.xlu0 %v1959, 12
    %v1969 = vpop.permute.xlu0 %1968
    %1970 = vrot.lane.b32.xlu0 %v1960, 12
    %v1971 = vpop.permute.xlu0 %1970
    %1972 = vrot.lane.b32.xlu0 %v1961, 12
    %v1973 = vpop.permute.xlu0 %1972
    %1974 = vrot.lane.b32.xlu0 %v1962, 12
    %v1975 = vpop.permute.xlu0 %1974
    %1976 = vrot.lane.b32.xlu0 %v1963, 12
    %v1977 = vpop.permute.xlu0 %1976
    %1978 = vrot.lane.b32.xlu0 %v1964, 12
    %v1979 = vpop.permute.xlu0 %1978
    %1980 = vrot.lane.b32.xlu0 %v1965, 12
    %v1981 = vpop.permute.xlu0 %1980
    %v1982 = vunpack.c.l.b16 %v1114
    %v1983 = vunpack.c.l.b16 %v1128
    %v1984 = vunpack.c.l.b16 %v1142
    %v1985 = vunpack.c.l.b16 %v1156
    %v1986 = vunpack.c.l.b16 %v1170
    %v1987 = vunpack.c.l.b16 %v1184
    %v1988 = vunpack.c.l.b16 %v1198
    %v1989 = vunpack.c.l.b16 %v1212
    %v1990 = vunpack.c.l.b16 %v1226
    %v1991 = vunpack.c.l.b16 %v1240
    %v1992 = vunpack.c.l.b16 %v1254
    %v1993 = vunpack.c.l.b16 %v1268
    %v1994 = vunpack.c.l.b16 %v1282
    %v1995 = vunpack.c.l.b16 %v1296
    %v1996 = vunpack.c.l.b16 %v1310
    %v1997 = vunpack.c.l.b16 %v1324
    %v1998 = vpack.c.b16 %v1983, %v1982
    %v1999 = vpack.c.b16 %v1985, %v1984
    %v2000 = vpack.c.b16 %v1987, %v1986
    %v2001 = vpack.c.b16 %v1989, %v1988
    %v2002 = vpack.c.b16 %v1991, %v1990
    %v2003 = vpack.c.b16 %v1993, %v1992
    %v2004 = vpack.c.b16 %v1995, %v1994
    %v2005 = vpack.c.b16 %v1997, %v1996
    %2006 = vrot.lane.b32.xlu0 %v1998, 16
    %v2007 = vpop.permute.xlu0 %2006
    %2008 = vrot.lane.b32.xlu0 %v1999, 16
    %v2009 = vpop.permute.xlu0 %2008
    %2010 = vrot.lane.b32.xlu0 %v2000, 16
    %v2011 = vpop.permute.xlu0 %2010
    %2012 = vrot.lane.b32.xlu0 %v2001, 16
    %v2013 = vpop.permute.xlu0 %2012
    %2014 = vrot.lane.b32.xlu0 %v2002, 16
    %v2015 = vpop.permute.xlu0 %2014
    %2016 = vrot.lane.b32.xlu0 %v2003, 16
    %v2017 = vpop.permute.xlu0 %2016
    %2018 = vrot.lane.b32.xlu0 %v2004, 16
    %v2019 = vpop.permute.xlu0 %2018
    %2020 = vrot.lane.b32.xlu0 %v2005, 16
    %v2021 = vpop.permute.xlu0 %2020
    %v2022 = vunpack.c.l.b16 %v1376
    %v2023 = vunpack.c.l.b16 %v1380
    %v2024 = vunpack.c.l.b16 %v1384
    %v2025 = vunpack.c.l.b16 %v1388
    %v2026 = vunpack.c.l.b16 %v1392
    %v2027 = vunpack.c.l.b16 %v1396
    %v2028 = vunpack.c.l.b16 %v1400
    %v2029 = vunpack.c.l.b16 %v1404
    %v2030 = vunpack.c.l.b16 %v1408
    %v2031 = vunpack.c.l.b16 %v1412
    %v2032 = vunpack.c.l.b16 %v1416
    %v2033 = vunpack.c.l.b16 %v1420
    %v2034 = vunpack.c.l.b16 %v1424
    %v2035 = vunpack.c.l.b16 %v1428
    %v2036 = vunpack.c.l.b16 %v1432
    %v2037 = vunpack.c.l.b16 %v1436
    %v2038 = vpack.c.b16 %v2023, %v2022
    %v2039 = vpack.c.b16 %v2025, %v2024
    %v2040 = vpack.c.b16 %v2027, %v2026
    %v2041 = vpack.c.b16 %v2029, %v2028
    %v2042 = vpack.c.b16 %v2031, %v2030
    %v2043 = vpack.c.b16 %v2033, %v2032
    %v2044 = vpack.c.b16 %v2035, %v2034
    %v2045 = vpack.c.b16 %v2037, %v2036
    %2046 = vrot.lane.b32.xlu0 %v2038, 20
    %v2047 = vpop.permute.xlu0 %2046
    %2048 = vrot.lane.b32.xlu0 %v2039, 20
    %v2049 = vpop.permute.xlu0 %2048
    %2050 = vrot.lane.b32.xlu0 %v2040, 20
    %v2051 = vpop.permute.xlu0 %2050
    %2052 = vrot.lane.b32.xlu0 %v2041, 20
    %v2053 = vpop.permute.xlu0 %2052
    %2054 = vrot.lane.b32.xlu0 %v2042, 20
    %v2055 = vpop.permute.xlu0 %2054
    %2056 = vrot.lane.b32.xlu0 %v2043, 20
    %v2057 = vpop.permute.xlu0 %2056
    %2058 = vrot.lane.b32.xlu0 %v2044, 20
    %v2059 = vpop.permute.xlu0 %2058
    %2060 = vrot.lane.b32.xlu0 %v2045, 20
    %v2061 = vpop.permute.xlu0 %2060
    %v2078 = vunpack.c.l.b16 %v1438
    %v2079 = vunpack.c.l.b16 %v1439
    %v2080 = vunpack.c.l.b16 %v1440
    %v2081 = vunpack.c.l.b16 %v1441
    %v2082 = vunpack.c.l.b16 %v1442
    %v2083 = vunpack.c.l.b16 %v1443
    %v2084 = vunpack.c.l.b16 %v1444
    %v2085 = vunpack.c.l.b16 %v1445
    %v2086 = vunpack.c.l.b16 %v1446
    %v2087 = vunpack.c.l.b16 %v1447
    %v2088 = vunpack.c.l.b16 %v1448
    %v2089 = vunpack.c.l.b16 %v1449
    %v2090 = vunpack.c.l.b16 %v1450
    %v2091 = vunpack.c.l.b16 %v1451
    %v2092 = vunpack.c.l.b16 %v1452
    %v2093 = vunpack.c.l.b16 %v1453
    %v2094 = vpack.c.b16 %v2079, %v2078
    %v2095 = vpack.c.b16 %v2081, %v2080
    %v2096 = vpack.c.b16 %v2083, %v2082
    %v2097 = vpack.c.b16 %v2085, %v2084
    %v2098 = vpack.c.b16 %v2087, %v2086
    %v2099 = vpack.c.b16 %v2089, %v2088
    %v2100 = vpack.c.b16 %v2091, %v2090
    %v2101 = vpack.c.b16 %v2093, %v2092
    %2102 = vrot.lane.b32.xlu0 %v2094, 24
    %v2103 = vpop.permute.xlu0 %2102
    %2104 = vrot.lane.b32.xlu0 %v2095, 24
    %v2105 = vpop.permute.xlu0 %2104
    %2106 = vrot.lane.b32.xlu0 %v2096, 24
    %v2107 = vpop.permute.xlu0 %2106
    %2108 = vrot.lane.b32.xlu0 %v2097, 24
    %v2109 = vpop.permute.xlu0 %2108
    %2110 = vrot.lane.b32.xlu0 %v2098, 24
    %v2111 = vpop.permute.xlu0 %2110
    %2112 = vrot.lane.b32.xlu0 %v2099, 24
    %v2113 = vpop.permute.xlu0 %2112
    %2114 = vrot.lane.b32.xlu0 %v2100, 24
    %v2115 = vpop.permute.xlu0 %2114
    %2116 = vrot.lane.b32.xlu0 %v2101, 24
    %v2117 = vpop.permute.xlu0 %2116
    %v2118 = vunpack.c.l.b16 %v1483
    %v2119 = vunpack.c.l.b16 %v1497
    %v2120 = vunpack.c.l.b16 %v1511
    %v2121 = vunpack.c.l.b16 %v1525
    %v2122 = vunpack.c.l.b16 %v1539
    %v2123 = vunpack.c.l.b16 %v1553
    %v2124 = vunpack.c.l.b16 %v1567
    %v2125 = vunpack.c.l.b16 %v1581
    %v2126 = vunpack.c.l.b16 %v1595
    %v2127 = vunpack.c.l.b16 %v1609
    %v2128 = vunpack.c.l.b16 %v1623
    %v2129 = vunpack.c.l.b16 %v1637
    %v2130 = vunpack.c.l.b16 %v1651
    %v2131 = vunpack.c.l.b16 %v1665
    %v2132 = vunpack.c.l.b16 %v1679
    %v2133 = vunpack.c.l.b16 %v1693
    %v2134 = vpack.c.b16 %v2119, %v2118
    %v2135 = vpack.c.b16 %v2121, %v2120
    %v2136 = vpack.c.b16 %v2123, %v2122
    %v2137 = vpack.c.b16 %v2125, %v2124
    %v2138 = vpack.c.b16 %v2127, %v2126
    %v2139 = vpack.c.b16 %v2129, %v2128
    %v2140 = vpack.c.b16 %v2131, %v2130
    %v2141 = vpack.c.b16 %v2133, %v2132
    %2142 = vrot.lane.b32.xlu0 %v2134, 28
    %v2143 = vpop.permute.xlu0 %2142
    %2144 = vrot.lane.b32.xlu0 %v2135, 28
    %v2145 = vpop.permute.xlu0 %2144
    %2146 = vrot.lane.b32.xlu0 %v2136, 28
    %v2147 = vpop.permute.xlu0 %2146
    %2148 = vrot.lane.b32.xlu0 %v2137, 28
    %v2149 = vpop.permute.xlu0 %2148
    %2150 = vrot.lane.b32.xlu0 %v2138, 28
    %v2151 = vpop.permute.xlu0 %2150
    %2152 = vrot.lane.b32.xlu0 %v2139, 28
    %v2153 = vpop.permute.xlu0 %2152
    %2154 = vrot.lane.b32.xlu0 %v2140, 28
    %v2155 = vpop.permute.xlu0 %2154
    %2156 = vrot.lane.b32.xlu0 %v2141, 28
    %v2157 = vpop.permute.xlu0 %2156
    %v2158 = vunpack.c.l.b16 %v1745
    %v2159 = vunpack.c.l.b16 %v1749
    %v2160 = vunpack.c.l.b16 %v1753
    %v2161 = vunpack.c.l.b16 %v1757
    %v2162 = vunpack.c.l.b16 %v1761
    %v2163 = vunpack.c.l.b16 %v1765
    %v2164 = vunpack.c.l.b16 %v1769
    %v2165 = vunpack.c.l.b16 %v1773
    %v2166 = vunpack.c.l.b16 %v1777
    %v2167 = vunpack.c.l.b16 %v1781
    %v2168 = vunpack.c.l.b16 %v1785
    %v2169 = vunpack.c.l.b16 %v1789
    %v2170 = vunpack.c.l.b16 %v1793
    %v2171 = vunpack.c.l.b16 %v1797
    %v2172 = vunpack.c.l.b16 %v1801
    %v2173 = vunpack.c.l.b16 %v1805
    %v2174 = vpack.c.b16 %v2159, %v2158
    %v2175 = vpack.c.b16 %v2161, %v2160
    %v2176 = vpack.c.b16 %v2163, %v2162
    %v2177 = vpack.c.b16 %v2165, %v2164
    %v2178 = vpack.c.b16 %v2167, %v2166
    %v2179 = vpack.c.b16 %v2169, %v2168
    %v2180 = vpack.c.b16 %v2171, %v2170
    %v2181 = vpack.c.b16 %v2173, %v2172
    %2182 = vrot.lane.b32.xlu0 %v2174, 32
    %v2183 = vpop.permute.xlu0 %2182
    %2184 = vrot.lane.b32.xlu0 %v2175, 32
    %v2185 = vpop.permute.xlu0 %2184
    %2186 = vrot.lane.b32.xlu0 %v2176, 32
    %v2187 = vpop.permute.xlu0 %2186
    %2188 = vrot.lane.b32.xlu0 %v2177, 32
    %v2189 = vpop.permute.xlu0 %2188
    %2190 = vrot.lane.b32.xlu0 %v2178, 32
    %v2191 = vpop.permute.xlu0 %2190
    %2192 = vrot.lane.b32.xlu0 %v2179, 32
    %v2193 = vpop.permute.xlu0 %2192
    %2194 = vrot.lane.b32.xlu0 %v2180, 32
    %v2195 = vpop.permute.xlu0 %2194
    %2196 = vrot.lane.b32.xlu0 %v2181, 32
    %v2197 = vpop.permute.xlu0 %2196
    %vm2198 = vcmask 31744
    %v2201 = vsel %vm2198, %v1838, %v1871
    %v2204 = vsel %vm2198, %v1839, %v1873
    %v2207 = vsel %vm2198, %v1840, %v1875
    %v2210 = vsel %vm2198, %v1841, %v1877
    %v2213 = vsel %vm2198, %v1842, %v1879
    %v2216 = vsel %vm2198, %v1843, %v1881
    %v2219 = vsel %vm2198, %v1844, %v1883
    %v2222 = vsel %vm2198, %v1845, %v1885
    %vm2223 = vcmask 64512
    %v2225 = vsel %vm2223, %v2201, %v1911
    %v2227 = vsel %vm2223, %v2204, %v1913
    %v2229 = vsel %vm2223, %v2207, %v1915
    %v2231 = vsel %vm2223, %v2210, %v1917
    %v2233 = vsel %vm2223, %v2213, %v1919
    %v2235 = vsel %vm2223, %v2216, %v1921
    %v2237 = vsel %vm2223, %v2219, %v1923
    %v2239 = vsel %vm2223, %v2222, %v1925
    %vm2240 = vcmask 97280
    %v2242 = vsel %vm2240, %v2225, %v1967
    %v2244 = vsel %vm2240, %v2227, %v1969
    %v2246 = vsel %vm2240, %v2229, %v1971
    %v2248 = vsel %vm2240, %v2231, %v1973
    %v2250 = vsel %vm2240, %v2233, %v1975
    %v2252 = vsel %vm2240, %v2235, %v1977
    %v2254 = vsel %vm2240, %v2237, %v1979
    %v2256 = vsel %vm2240, %v2239, %v1981
    %v2258 = vsel %vm154, %v2242, %v2007
    %v2260 = vsel %vm154, %v2244, %v2009
    %v2262 = vsel %vm154, %v2246, %v2011
    %v2264 = vsel %vm154, %v2248, %v2013
    %v2266 = vsel %vm154, %v2250, %v2015
    %v2268 = vsel %vm154, %v2252, %v2017
    %v2270 = vsel %vm154, %v2254, %v2019
    %v2272 = vsel %vm154, %v2256, %v2021
    %vm2273 = vcmask 162816
    %v2275 = vsel %vm2273, %v2258, %v2047
    %v2277 = vsel %vm2273, %v2260, %v2049
    %v2279 = vsel %vm2273, %v2262, %v2051
    %v2281 = vsel %vm2273, %v2264, %v2053
    %v2283 = vsel %vm2273, %v2266, %v2055
    %v2285 = vsel %vm2273, %v2268, %v2057
    %v2287 = vsel %vm2273, %v2270, %v2059
    %v2289 = vsel %vm2273, %v2272, %v2061
    %vm2290 = vcmask 195584
    %v2292 = vsel %vm2290, %v2275, %v2103
    %v2294 = vsel %vm2290, %v2277, %v2105
    %v2296 = vsel %vm2290, %v2279, %v2107
    %v2298 = vsel %vm2290, %v2281, %v2109
    %v2300 = vsel %vm2290, %v2283, %v2111
    %v2302 = vsel %vm2290, %v2285, %v2113
    %v2304 = vsel %vm2290, %v2287, %v2115
    %v2306 = vsel %vm2290, %v2289, %v2117
    %vm2307 = vcmask 228352
    %v2309 = vsel %vm2307, %v2292, %v2143
    %v2311 = vsel %vm2307, %v2294, %v2145
    %v2313 = vsel %vm2307, %v2296, %v2147
    %v2315 = vsel %vm2307, %v2298, %v2149
    %v2317 = vsel %vm2307, %v2300, %v2151
    %v2319 = vsel %vm2307, %v2302, %v2153
    %v2321 = vsel %vm2307, %v2304, %v2155
    %v2323 = vsel %vm2307, %v2306, %v2157
    %vm2324 = vcmask 261120
    %v2326 = vsel %vm2324, %v2309, %v2183
    %v2328 = vsel %vm2324, %v2311, %v2185
    %v2330 = vsel %vm2324, %v2313, %v2187
    %v2332 = vsel %vm2324, %v2315, %v2189
    %v2334 = vsel %vm2324, %v2317, %v2191
    %v2336 = vsel %vm2324, %v2319, %v2193
    %v2338 = vsel %vm2324, %v2321, %v2195
    %v2340 = vsel %vm2324, %v2323, %v2197
    %v2341 = vld [vmem:[%s7] sm:$0xf]
    %v2342 = vld [vmem:[%s7 + $0x4] sm:$0xf]
    %v2343 = vld [vmem:[%s7 + $0x8] sm:$0xf]
    %v2344 = vld [vmem:[%s7 + $0xc] sm:$0xf]
    %v2345 = vld [vmem:[%s7 + $0x10] sm:$0x3]
    %v2346 = vld [vmem:[%s8] sm:$0x1]
    %v2348 = vperm.slane %v2346, 0
    %v2355 = vunpack.c.l.b16 %v2341
    %v2356 = vunpack.c.l.b16 %v2342
    %v2357 = vunpack.c.l.b16 %v2343
    %v2358 = vunpack.c.l.b16 %v2344
    %v2359 = vunpack.c.l.b16 %v2345
    %v2360 = vpack.c.b16 %v2356, %v2355
    %v2361 = vpack.c.b16 %v2358, %v2357
    %v2362 = vpack.c.b16 %v2359, %v2359
    %vm2365 = vcmask 293888
    %v2366 = vsel %vm2365, %v2326, 0
    %v2368 = vsel %vm2365, %v2328, 0
    %v2370 = vsel %vm2365, %v2330, 0
    %v2372 = vsel %vm2365, %v2332, 0
    %v2374 = vsel %vm2365, %v2334, 0
    %v2376 = vsel %vm2365, %v2336, 0
    %v2378 = vsel %vm2365, %v2338, 0
    %v2380 = vsel %vm2365, %v2340, 0
    %vm2382 = vcmask 1041408
    %v2384 = vsel %vm2382, %v2362, 0
    %2386 = vmatpush.bf16.msra.mxu0 0
    %2387 = vmatpush.bf16.msra.mxu0 0
    %2388 = vmatpush.bf16.msra.mxu0 0
    %2389 = vmatpush.bf16.msra.mxu0 0
    %2390 = vmatpush.bf16.msra.mxu0 0
    %2391 = vmatpush.bf16.msra.mxu0 %v2384
    %2392 = vmatpush.bf16.msra.mxu0 %v2361
    %2393 = vmatpush.bf16.msra.mxu0 %v2360
    %2394 = vmatmul.bf16.gmra.mxu0 %v2366
    %v2395 = vpop.f32.mrf.mxu0
    %v2396 = vadd.f32 %v2348, %v2395
    %v2397 = vpop.f32.mrf.mxu0
    %v2398 = vadd.f32 %v2348, %v2397
    %2399 = vmatmul.bf16.gmra.mxu0 %v2368
    %v2400 = vpop.f32.mrf.mxu0
    %v2401 = vadd.f32 %v2348, %v2400
    %v2402 = vpop.f32.mrf.mxu0
    %v2403 = vadd.f32 %v2348, %v2402
    %2404 = vmatmul.bf16.gmra.mxu0 %v2370
    %v2405 = vpop.f32.mrf.mxu0
    %v2406 = vadd.f32 %v2348, %v2405
    %v2407 = vpop.f32.mrf.mxu0
    %v2408 = vadd.f32 %v2348, %v2407
    %2409 = vmatmul.bf16.gmra.mxu0 %v2372
    %v2410 = vpop.f32.mrf.mxu0
    %v2411 = vadd.f32 %v2348, %v2410
    %v2412 = vpop.f32.mrf.mxu0
    %v2413 = vadd.f32 %v2348, %v2412
    %2414 = vmatmul.bf16.gmra.mxu0 %v2374
    %v2415 = vpop.f32.mrf.mxu0
    %v2416 = vadd.f32 %v2348, %v2415
    %v2417 = vpop.f32.mrf.mxu0
    %v2418 = vadd.f32 %v2348, %v2417
    %2419 = vmatmul.bf16.gmra.mxu0 %v2376
    %v2420 = vpop.f32.mrf.mxu0
    %v2421 = vadd.f32 %v2348, %v2420
    %v2422 = vpop.f32.mrf.mxu0
    %v2423 = vadd.f32 %v2348, %v2422
    %2424 = vmatmul.bf16.gmra.mxu0 %v2378
    %v2425 = vpop.f32.mrf.mxu0
    %v2426 = vadd.f32 %v2348, %v2425
    %v2427 = vpop.f32.mrf.mxu0
    %v2428 = vadd.f32 %v2348, %v2427
    %2429 = vmatmul.bf16.gmra.mxu0 %v2380
    %v2430 = vpop.f32.mrf.mxu0
    %v2431 = vadd.f32 %v2348, %v2430
    %v2432 = vpop.f32.mrf.mxu0
    %v2433 = vadd.f32 %v2348, %v2432
    %2434 = vdwg.mxu0
    %v2435 = vld [vmem:[%s9] sm:$0x1]
    %v2437 = vperm.slane %v2435, 0
    %v2439 = vmul.f32 %v2396, %v2437
    %v2440 = vmul.f32 %v2398, %v2437
    %v2441 = vmul.f32 %v2401, %v2437
    %v2442 = vmul.f32 %v2403, %v2437
    %v2443 = vmul.f32 %v2406, %v2437
    %v2444 = vmul.f32 %v2408, %v2437
    %v2445 = vmul.f32 %v2411, %v2437
    %v2446 = vmul.f32 %v2413, %v2437
    %v2447 = vmul.f32 %v2416, %v2437
    %v2448 = vmul.f32 %v2418, %v2437
    %v2449 = vmul.f32 %v2421, %v2437
    %v2450 = vmul.f32 %v2423, %v2437
    %v2451 = vmul.f32 %v2426, %v2437
    %v2452 = vmul.f32 %v2428, %v2437
    %v2453 = vmul.f32 %v2431, %v2437
    %v2454 = vmul.f32 %v2433, %v2437
    %v2455 = vld [vmem:[%s10] sm:$0x1]
    %v2457 = vperm.slane %v2455, 0
    %v2459 = vadd.f32 %v2439, %v2457
    %v2460 = vadd.f32 %v2440, %v2457
    %v2461 = vadd.f32 %v2441, %v2457
    %v2462 = vadd.f32 %v2442, %v2457
    %v2463 = vadd.f32 %v2443, %v2457
    %v2464 = vadd.f32 %v2444, %v2457
    %v2465 = vadd.f32 %v2445, %v2457
    %v2466 = vadd.f32 %v2446, %v2457
    %v2467 = vadd.f32 %v2447, %v2457
    %v2468 = vadd.f32 %v2448, %v2457
    %v2469 = vadd.f32 %v2449, %v2457
    %v2470 = vadd.f32 %v2450, %v2457
    %v2471 = vadd.f32 %v2451, %v2457
    %v2472 = vadd.f32 %v2452, %v2457
    %v2473 = vadd.f32 %v2453, %v2457
    %v2474 = vadd.f32 %v2454, %v2457
    %v2475 = vmax.f32 %v2459, 0.0
    %v2476 = vmax.f32 %v2460, 0.0
    %v2477 = vmax.f32 %v2461, 0.0
    %v2478 = vmax.f32 %v2462, 0.0
    %v2479 = vmax.f32 %v2463, 0.0
    %v2480 = vmax.f32 %v2464, 0.0
    %v2481 = vmax.f32 %v2465, 0.0
    %v2482 = vmax.f32 %v2466, 0.0
    %v2483 = vmax.f32 %v2467, 0.0
    %v2484 = vmax.f32 %v2468, 0.0
    %v2485 = vmax.f32 %v2469, 0.0
    %v2486 = vmax.f32 %v2470, 0.0
    %v2487 = vmax.f32 %v2471, 0.0
    %v2488 = vmax.f32 %v2472, 0.0
    %v2489 = vmax.f32 %v2473, 0.0
    %v2490 = vmax.f32 %v2474, 0.0
    %v2491 = vpack.c.bf16 %v2476, %v2475
    %v2492 = vpack.c.bf16 %v2478, %v2477
    %v2493 = vpack.c.bf16 %v2480, %v2479
    %v2494 = vpack.c.bf16 %v2482, %v2481
    %v2495 = vpack.c.bf16 %v2484, %v2483
    %v2496 = vpack.c.bf16 %v2486, %v2485
    %v2497 = vpack.c.bf16 %v2488, %v2487
    %v2498 = vpack.c.bf16 %v2490, %v2489
    %v2499 = vld [vmem:[%s11] sm:$0x3]
    %v2500 = vld [vmem:[%s12] sm:$0x1]
    %v2502 = vperm.slane %v2500, 0
    %v2505 = vsel %vm2198, %v2491, 0
    %v2508 = vsel %vm2198, %v2492, 0
    %v2511 = vsel %vm2198, %v2493, 0
    %v2514 = vsel %vm2198, %v2494, 0
    %v2517 = vsel %vm2198, %v2495, 0
    %v2520 = vsel %vm2198, %v2496, 0
    %v2523 = vsel %vm2198, %v2497, 0
    %v2526 = vsel %vm2198, %v2498, 0
    %v2529 = vsel %vm2382, %v2499, 0
    %2531 = vmatpush.bf16.msra.mxu0 0
    %2532 = vmatpush.bf16.msra.mxu0 0
    %2533 = vmatpush.bf16.msra.mxu0 0
    %2534 = vmatpush.bf16.msra.mxu0 0
    %2535 = vmatpush.bf16.msra.mxu0 0
    %2536 = vmatpush.bf16.msra.mxu0 0
    %2537 = vmatpush.bf16.msra.mxu0 0
    %2538 = vmatpush.bf16.msra.mxu0 %v2529
    %2539 = vmatmul.bf16.gmra.mxu0 %v2505
    %v2540 = vpop.f32.mrf.mxu0
    %v2541 = vadd.f32 %v2502, %v2540
    %v2542 = vpop.f32.mrf.mxu0
    %v2543 = vadd.f32 %v2502, %v2542
    %2544 = vmatmul.bf16.gmra.mxu0 %v2508
    %v2545 = vpop.f32.mrf.mxu0
    %v2546 = vadd.f32 %v2502, %v2545
    %v2547 = vpop.f32.mrf.mxu0
    %v2548 = vadd.f32 %v2502, %v2547
    %2549 = vmatmul.bf16.gmra.mxu0 %v2511
    %v2550 = vpop.f32.mrf.mxu0
    %v2551 = vadd.f32 %v2502, %v2550
    %v2552 = vpop.f32.mrf.mxu0
    %v2553 = vadd.f32 %v2502, %v2552
    %2554 = vmatmul.bf16.gmra.mxu0 %v2514
    %v2555 = vpop.f32.mrf.mxu0
    %v2556 = vadd.f32 %v2502, %v2555
    %v2557 = vpop.f32.mrf.mxu0
    %v2558 = vadd.f32 %v2502, %v2557
    %2559 = vmatmul.bf16.gmra.mxu0 %v2517
    %v2560 = vpop.f32.mrf.mxu0
    %v2561 = vadd.f32 %v2502, %v2560
    %v2562 = vpop.f32.mrf.mxu0
    %v2563 = vadd.f32 %v2502, %v2562
    %2564 = vmatmul.bf16.gmra.mxu0 %v2520
    %v2565 = vpop.f32.mrf.mxu0
    %v2566 = vadd.f32 %v2502, %v2565
    %v2567 = vpop.f32.mrf.mxu0
    %v2568 = vadd.f32 %v2502, %v2567
    %2569 = vmatmul.bf16.gmra.mxu0 %v2523
    %v2570 = vpop.f32.mrf.mxu0
    %v2571 = vadd.f32 %v2502, %v2570
    %v2572 = vpop.f32.mrf.mxu0
    %v2573 = vadd.f32 %v2502, %v2572
    %2574 = vmatmul.bf16.gmra.mxu0 %v2526
    %v2575 = vpop.f32.mrf.mxu0
    %v2576 = vadd.f32 %v2502, %v2575
    %v2577 = vpop.f32.mrf.mxu0
    %v2578 = vadd.f32 %v2502, %v2577
    %2579 = vdwg.mxu0
    %v2580 = vld [vmem:[#allocation3] sm:$0xff]
    %v2581 = vld [vmem:[#allocation3 + $0x8] sm:$0xff]
    %v2582 = vld [vmem:[#allocation3 + $0x10] sm:$0xff]
    %v2583 = vld [vmem:[#allocation3 + $0x18] sm:$0xff]
    %v2584 = vld [vmem:[#allocation3 + $0x20] sm:$0xff]
    %v2585 = vld [vmem:[#allocation3 + $0x28] sm:$0xff]
    %v2586 = vld [vmem:[#allocation3 + $0x30] sm:$0xff]
    %v2587 = vld [vmem:[#allocation3 + $0x38] sm:$0xff]
    %v2588 = vld [vmem:[#allocation3 + $0x40] sm:$0xff]
    %v2589 = vld [vmem:[#allocation3 + $0x48] sm:$0xff]
    %v2590 = vld [vmem:[#allocation3 + $0x50] sm:$0xff]
    %v2591 = vld [vmem:[#allocation3 + $0x58] sm:$0xff]
    %v2592 = vld [vmem:[#allocation3 + $0x60] sm:$0xff]
    %v2593 = vld [vmem:[#allocation3 + $0x68] sm:$0xff]
    %v2594 = vld [vmem:[#allocation3 + $0x70] sm:$0xff]
    %v2595 = vld [vmem:[#allocation3 + $0x78] sm:$0xff]
    %v2596 = vadd.f32 %v2541, %v2580
    %v2597 = vadd.f32 %v2543, %v2581
    %v2598 = vadd.f32 %v2546, %v2582
    %v2599 = vadd.f32 %v2548, %v2583
    %v2600 = vadd.f32 %v2551, %v2584
    %v2601 = vadd.f32 %v2553, %v2585
    %v2602 = vadd.f32 %v2556, %v2586
    %v2603 = vadd.f32 %v2558, %v2587
    %v2604 = vadd.f32 %v2561, %v2588
    %v2605 = vadd.f32 %v2563, %v2589
    %v2606 = vadd.f32 %v2566, %v2590
    %v2607 = vadd.f32 %v2568, %v2591
    %v2608 = vadd.f32 %v2571, %v2592
    %v2609 = vadd.f32 %v2573, %v2593
    %v2610 = vadd.f32 %v2576, %v2594
    %v2611 = vadd.f32 %v2578, %v2595
    %2612 = vst.msk [vmem:[#allocation6] sm:$0xff] %vm154, %v2596
    %2613 = vst.msk [vmem:[#allocation6 + $0x8] sm:$0xff] %vm154, %v2597
    %2614 = vst.msk [vmem:[#allocation6 + $0x10] sm:$0xff] %vm154, %v2598
    %2615 = vst.msk [vmem:[#allocation6 + $0x18] sm:$0xff] %vm154, %v2599
    %2616 = vst.msk [vmem:[#allocation6 + $0x20] sm:$0xff] %vm154, %v2600
    %2617 = vst.msk [vmem:[#allocation6 + $0x28] sm:$0xff] %vm154, %v2601
    %2618 = vst.msk [vmem:[#allocation6 + $0x30] sm:$0xff] %vm154, %v2602
    %2619 = vst.msk [vmem:[#allocation6 + $0x38] sm:$0xff] %vm154, %v2603
    %2620 = vst.msk [vmem:[#allocation6 + $0x40] sm:$0xff] %vm154, %v2604
    %2621 = vst.msk [vmem:[#allocation6 + $0x48] sm:$0xff] %vm154, %v2605
    %2622 = vst.msk [vmem:[#allocation6 + $0x50] sm:$0xff] %vm154, %v2606
    %2623 = vst.msk [vmem:[#allocation6 + $0x58] sm:$0xff] %vm154, %v2607
    %2624 = vst.msk [vmem:[#allocation6 + $0x60] sm:$0xff] %vm154, %v2608
    %2625 = vst.msk [vmem:[#allocation6 + $0x68] sm:$0xff] %vm154, %v2609
    %2626 = vst.msk [vmem:[#allocation6 + $0x70] sm:$0xff] %vm154, %v2610
    %2627 = vst.msk [vmem:[#allocation6 + $0x78] sm:$0xff] %vm154, %v2611
    // Predicated region
    $region58: #{residual_block_forward.1} parent=1 // pred_check
      _
    $region59: #{residual_block_forward.1} parent=1 // pred_check_branch
      %2629 = sbr.rel (0) target = $region61
    $region60: #{residual_block_forward.1} parent=1 // pred_region
      %2631 = vsyncadd [#allocation5], 0
      %s2632 = sshll.u32 [#allocation6], 4
      %s2633 = int_to_ptr.vmem [resolvable:$true] %s2632
      %s2634 = sshll.u32 %s13, 4
      %s2635 = int_to_ptr.hbm [resolvable:$true] %s2634
      %2640 = dma.vmem_to_hbm [thread:$0]  %s2633, 2048, %s2635, [#allocation5], 128, 128, 8
    $region61: #{residual_block_forward.1} parent=1 // pred_fallthru
      _
    // Predicated region
    $region62: #{residual_block_forward.1} parent=1 // pred_check
      _
    $region63: #{residual_block_forward.1} parent=1 // pred_check_branch
      %2642 = sbr.rel (0) target = $region65
    $region64: #{residual_block_forward.1} parent=1 // pred_region
      %2644 = dma.done [#allocation5], 2048
    $region65: #{residual_block_forward.1} parent=1 // pred_fallthru
      _
    %2645 = vsyncpa [#allocation4], 1
    %2646 = vsyncpa [#allocation5], 1

</llo_original>
